<compile_context>
chip_gen: v7x
topology: tpu7x:2x2x1
jax: 0.10.0
libtpu: 0.0.40
codegen_flags: <defaults>
</compile_context>

<pallas_src>
import jax
import jax.numpy as jnp
import numpy as np
from jax.experimental import pallas as pl
from jax.experimental.pallas import tpu as pltpu

EPS = 1e-5


# ---------------------------------------------------------------------------
# Pallas kernels
# ---------------------------------------------------------------------------
def _conv_stats_kernel(x_ref, m_ref, y_ref, st_ref):
    """3x3 conv (as 3 banded matmuls) + per-image BN partial stats.

    x_ref : (H+2, W*C_in)        bf16  H-padded input slab for one image
    m_ref : (3, W*C_in, W*C_out) bf16  banded weight matrices (one per ky)
    y_ref : (H, W*C_out)         f32   pre-BN conv output
    st_ref: (2, W*C_out)         f32   [sum; sum of squares] over this image
    """
    h = y_ref.shape[0]
    acc = jnp.dot(x_ref[pl.ds(0, h), :], m_ref[0],
                  preferred_element_type=jnp.float32)
    acc += jnp.dot(x_ref[pl.ds(1, h), :], m_ref[1],
                   preferred_element_type=jnp.float32)
    acc += jnp.dot(x_ref[pl.ds(2, h), :], m_ref[2],
                   preferred_element_type=jnp.float32)
    y_ref[...] = acc
    st_ref[pl.ds(0, 1), :] = jnp.sum(acc, axis=0, keepdims=True)
    st_ref[pl.ds(1, 1), :] = jnp.sum(acc * acc, axis=0, keepdims=True)


def _bn_relu_conv_stats_kernel(y1_ref, m_ref, s1_ref, t1_ref,
                               y2_ref, st_ref, rbuf):
    """BN1 + ReLU (recomputed in-kernel) -> 3x3 conv2 + BN2 partial stats.

    y1_ref : (H, W*C)    f32   pre-BN conv1 output for one image
    m_ref  : (3, W*C, W*C) bf16 banded conv2 weights
    s1/t1  : (1, W*C)    f32   BN1 scale/shift broadcast over lanes
    y2_ref : (H, W*C)    f32   pre-BN conv2 output
    st_ref : (2, W*C)    f32   partial [sum; sumsq]
    rbuf   : (H+2, W*C)  f32   VMEM scratch: relu1 with zero halo rows
    """
    h = y1_ref.shape[0]
    wc = y1_ref.shape[1]
    relu1 = jnp.maximum(y1_ref[...] * s1_ref[...] + t1_ref[...], 0.0)
    rbuf[pl.ds(0, 1), :] = jnp.zeros((1, wc), jnp.float32)
    rbuf[pl.ds(h + 1, 1), :] = jnp.zeros((1, wc), jnp.float32)
    rbuf[pl.ds(1, h), :] = relu1
    acc = jnp.dot(rbuf[pl.ds(0, h), :].astype(jnp.bfloat16), m_ref[0],
                  preferred_element_type=jnp.float32)
    acc += jnp.dot(rbuf[pl.ds(1, h), :].astype(jnp.bfloat16), m_ref[1],
                   preferred_element_type=jnp.float32)
    acc += jnp.dot(rbuf[pl.ds(2, h), :].astype(jnp.bfloat16), m_ref[2],
                   preferred_element_type=jnp.float32)
    y2_ref[...] = acc
    st_ref[pl.ds(0, 1), :] = jnp.sum(acc, axis=0, keepdims=True)
    st_ref[pl.ds(1, 1), :] = jnp.sum(acc * acc, axis=0, keepdims=True)


def _bn_add_relu_kernel(rsrc_ref, y2_ref, rs_ref, rt_ref, s2_ref, t2_ref,
                        out_ref):
    """out = relu(resid + BN2(conv2)); resid = rs*rsrc + rt (identity or BN1)."""
    resid = rsrc_ref[...] * rs_ref[...] + rt_ref[...]
    out_ref[...] = jnp.maximum(
        resid + y2_ref[...] * s2_ref[...] + t2_ref[...], 0.0)


# ---------------------------------------------------------------------------
# pallas_call wrappers
# ---------------------------------------------------------------------------
def _img_spec(nrows, ncols):
    # One image per grid step; last two block dims span the full array (always
    # a legal TPU block) and the minor dim (W*C) is lane-dense.
    return pl.BlockSpec((None, nrows, ncols), lambda n: (n, 0, 0))


def _full_spec(shape):
    nd = len(shape)
    return pl.BlockSpec(shape, lambda n: (0,) * nd)


_PARALLEL = pltpu.CompilerParams(dimension_semantics=("parallel",))


def conv_stats(x3, m):
    n, hp2, wci = x3.shape
    h = hp2 - 2
    wco = m.shape[2]
    return pl.pallas_call(
        _conv_stats_kernel,
        grid=(n,),
        in_specs=[_img_spec(hp2, wci), _full_spec(m.shape)],
        out_specs=(_img_spec(h, wco), _img_spec(2, wco)),
        out_shape=(jax.ShapeDtypeStruct((n, h, wco), jnp.float32),
                   jax.ShapeDtypeStruct((n, 2, wco), jnp.float32)),
        compiler_params=_PARALLEL,
    )(x3, m)


def bn_relu_conv_stats(y1, m, s1, t1):
    n, h, wc = y1.shape
    return pl.pallas_call(
        _bn_relu_conv_stats_kernel,
        grid=(n,),
        in_specs=[_img_spec(h, wc), _full_spec(m.shape),
                  _full_spec((1, wc)), _full_spec((1, wc))],
        out_specs=(_img_spec(h, wc), _img_spec(2, wc)),
        out_shape=(jax.ShapeDtypeStruct((n, h, wc), jnp.float32),
                   jax.ShapeDtypeStruct((n, 2, wc), jnp.float32)),
        scratch_shapes=[pltpu.VMEM((h + 2, wc), jnp.float32)],
        compiler_params=_PARALLEL,
    )(y1, m, s1, t1)


def bn_add_relu(rsrc, y2, rs, rt, s2, t2):
    n, h, wc = y2.shape
    return pl.pallas_call(
        _bn_add_relu_kernel,
        grid=(n,),
        in_specs=[_img_spec(h, wc), _img_spec(h, wc),
                  _full_spec((1, wc)), _full_spec((1, wc)),
                  _full_spec((1, wc)), _full_spec((1, wc))],
        out_specs=_img_spec(h, wc),
        out_shape=jax.ShapeDtypeStruct((n, h, wc), jnp.float32),
        compiler_params=_PARALLEL,
    )(rsrc, y2, rs, rt, s2, t2)


# ---------------------------------------------------------------------------
# Glue (tiny, plain JAX): banded weights, BN scale/shift from partial stats
# ---------------------------------------------------------------------------
def _band_weights(w_oihw, width):
    """OIHW (C_out, C_in, 3, 3) conv weight -> (3, W*C_in, W*C_out) banded
    matmul matrices.  padding=1 along W is encoded by the band structure."""
    c_out, c_in, kh, kw = w_oihw.shape
    mats = []
    for dy in range(kh):
        m = jnp.zeros((width * c_in, width * c_out), jnp.float32)
        for dx in range(kw):
            shift = jnp.eye(width, width, k=1 - dx, dtype=jnp.float32)
            m = m + jnp.kron(shift, jnp.transpose(w_oihw[:, :, dy, dx]))
        mats.append(m)
    return jnp.stack(mats, axis=0).astype(jnp.bfloat16)


def _bn_scale_shift(stats, gamma, beta, count, width):
    """Per-image partial [sum; sumsq] -> lane-broadcast BN scale/shift."""
    s = jnp.sum(stats, axis=0)                 # (2, W*C)
    s = s.reshape(2, width, -1).sum(axis=1)    # (2, C)
    mean = s[0] / count
    var = s[1] / count - mean * mean           # biased var (PyTorch BN training)
    scale = gamma * jax.lax.rsqrt(var + EPS)
    shift = beta - mean * scale
    return (jnp.tile(scale, width)[None, :].astype(jnp.float32),
            jnp.tile(shift, width)[None, :].astype(jnp.float32))


def res_block_forward(x_nchw, w1, b1, w2, b2, gamma, beta):
    # b1/b2 are accepted for interface parity but intentionally unused:
    # training-mode BN subtracts the batch mean, which cancels a per-channel
    # conv bias exactly (perf-review item; saves two adds + two DMAs).
    del b1, b2
    n, c_in, hh, ww = x_nchw.shape
    c_out = w1.shape[0]
    assert w1.shape[2:] == (3, 3) and w2.shape[2:] == (3, 3), "k=3 only"
    count = n * hh * ww

    # NCHW -> per-image lane-dense slabs (H+2, W*C_in); zero rows = H padding.
    x_nhwc = jnp.transpose(x_nchw, (0, 2, 3, 1)).astype(jnp.float32)
    x_hpad = jnp.pad(x_nhwc, ((0, 0), (1, 1), (0, 0), (0, 0)))
    x3 = x_hpad.reshape(n, hh + 2, ww * c_in).astype(jnp.bfloat16)

    m1 = _band_weights(w1, ww)                 # (3, W*C_in,  W*C_out) bf16
    m2 = _band_weights(w2, ww)                 # (3, W*C_out, W*C_out) bf16

    # Pass 1: conv1 + BN1 partial stats.
    y1, st1 = conv_stats(x3, m1)
    s1, t1 = _bn_scale_shift(st1, gamma, beta, count, ww)

    # Pass 2: BN1+ReLU recomputed in-kernel (never stored) + conv2 + stats.
    y2, st2 = bn_relu_conv_stats(y1, m2, s1, t1)
    s2, t2 = _bn_scale_shift(st2, gamma, beta, count, ww)

    # Pass 3: residual + BN2 + ReLU.
    resize = (c_out != c_in)        # k=3, s=1, p=1 -> resize iff c_out != c_in
    if resize:
        rsrc, rs, rt = y1, s1, t1   # resid = BN1(conv1(x)), recomputed cheaply
    else:
        rsrc = x_nhwc.reshape(n, hh, ww * c_in)
        rs = jnp.ones((1, ww * c_out), jnp.float32)
        rt = jnp.zeros((1, ww * c_out), jnp.float32)
    out = bn_add_relu(rsrc, y2, rs, rt, s2, t2)

    return jnp.transpose(out.reshape(n, hh, ww, c_out), (0, 3, 1, 2))


# ---------------------------------------------------------------------------
# Pure-JAX reference (mirrors the PyTorch forward, training-mode BN).
# Conv operands are rounded to bf16 to model the MXU operand precision used
# by the kernels (accumulation stays f32), so the comparison stays tight.
# Bias is kept here to demonstrate it is cancelled by BN as claimed.
# ---------------------------------------------------------------------------
def ref_forward(x, w1, b1, w2, b2, gamma, beta):
    def q(a):
        return a.astype(jnp.bfloat16).astype(jnp.float32)

    def conv(inp, w, b):
        y = jax.lax.conv_general_dilated(
            q(inp), q(w), window_strides=(1, 1), padding=((1, 1), (1, 1)),
            dimension_numbers=('NCHW', 'OIHW', 'NCHW'))
        return y + b[None, :, None, None]

    def bn(y):
        m = jnp.mean(y, axis=(0, 2, 3), keepdims=True)
        v = jnp.mean((y - m) ** 2, axis=(0, 2, 3), keepdims=True)
        return (gamma[None, :, None, None] * (y - m) * jax.lax.rsqrt(v + EPS)
                + beta[None, :, None, None])

    c1 = bn(conv(x, w1, b1))
    r = jnp.maximum(c1, 0.0)
    c2 = bn(conv(r, w2, b2))
    resid = c1 if (w1.shape[0] != w1.shape[1]) else x
    return jnp.maximum(resid + c2, 0.0)


# ---------------------------------------------------------------------------
if __name__ == "__main__":
    N, C_IN, C_OUT, H, W = 2, 4, 8, 16, 16     # ResBlock(c_in=4, c_out=8, k=3)

    key = jax.random.PRNGKey(0)
    kx, k1, k2, k3, k4, k5, k6 = jax.random.split(key, 7)
    x = jax.random.normal(kx, (N, C_IN, H, W), jnp.float32)
    w1 = 0.2 * jax.random.normal(k1, (C_OUT, C_IN, 3, 3), jnp.float32)
    b1 = 0.1 * jax.random.normal(k2, (C_OUT,), jnp.float32)
    w2 = 0.2 * jax.random.normal(k3, (C_OUT, C_OUT, 3, 3), jnp.float32)
    b2 = 0.1 * jax.random.normal(k4, (C_OUT,), jnp.float32)
    gamma = 1.0 + 0.1 * jax.random.normal(k5, (C_OUT,), jnp.float32)
    beta = 0.1 * jax.random.normal(k6, (C_OUT,), jnp.float32)

    fwd = jax.jit(res_block_forward)
    out = jax.block_until_ready(fwd(x, w1, b1, w2, b2, gamma, beta))
    assert out.shape == (N, C_OUT, H, W)

    ref = jax.block_until_ready(ref_forward(x, w1, b1, w2, b2, gamma, beta))
    np.testing.assert_allclose(np.asarray(out), np.asarray(ref),
                               rtol=1e-2, atol=1e-2)
    print("KERNEL_OK")
</pallas_src>

<mosaic_0001>
module attributes {stable_mosaic.version = 11 : i64} {
  func.func @_conv_stats_kernel(%arg0: i32, %arg1: memref<1x18x64xbf16, #tpu.memory_space<vmem>>, %arg2: memref<3x64x128xbf16, #tpu.memory_space<vmem>>, %arg3: memref<1x16x128xf32, #tpu.memory_space<vmem>>, %arg4: memref<1x2x128xf32, #tpu.memory_space<vmem>>) attributes {dimension_semantics = [#tpu.dimension_semantics<parallel>], iteration_bounds = array<i64: 2>, scalar_prefetch = 0 : i64, scratch_operands = 0 : i64, tpu.core_type = #tpu.core_type<tc>, window_params = [{transform_indices = @transform_0, window_bounds = array<i64: 1, 18, 64>}, {pipeline_mode = #tpu.pipeline_mode<synchronous>, transform_indices = @transform_1, window_bounds = array<i64: 3, 64, 128>}, {transform_indices = @transform_2, window_bounds = array<i64: 1, 16, 128>}, {transform_indices = @transform_3, window_bounds = array<i64: 1, 2, 128>}]} {
    %c0 = arith.constant 0 : index
    %c0_0 = arith.constant 0 : index
    %c0_1 = arith.constant 0 : index
    %0 = vector.load %arg1[%c0, %c0_0, %c0_1] : memref<1x18x64xbf16, #tpu.memory_space<vmem>>, vector<1x16x64xbf16>
    %1 = vector.shape_cast %0 : vector<1x16x64xbf16> to vector<16x64xbf16>
    %c0_2 = arith.constant 0 : index
    %c0_3 = arith.constant 0 : index
    %c0_4 = arith.constant 0 : index
    %2 = vector.load %arg2[%c0_2, %c0_3, %c0_4] : memref<3x64x128xbf16, #tpu.memory_space<vmem>>, vector<1x64x128xbf16>
    %3 = vector.shape_cast %2 : vector<1x64x128xbf16> to vector<64x128xbf16>
    %cst = arith.constant dense<0.000000e+00> : vector<16x128xf32>
    %4 = tpu.matmul %1, %3, %cst {dimension_numbers = #tpu.dot_dimension_numbers<[1], [0], [0], [1], [0, 0, 1, 1], [], []>} : vector<16x64xbf16>, vector<64x128xbf16>, vector<16x128xf32> -> vector<16x128xf32>
    %c0_5 = arith.constant 0 : index
    %c1 = arith.constant 1 : index
    %c0_6 = arith.constant 0 : index
    %5 = vector.load %arg1[%c0_5, %c1, %c0_6] : memref<1x18x64xbf16, #tpu.memory_space<vmem>>, vector<1x16x64xbf16>
    %6 = vector.shape_cast %5 : vector<1x16x64xbf16> to vector<16x64xbf16>
    %c1_7 = arith.constant 1 : index
    %c0_8 = arith.constant 0 : index
    %c0_9 = arith.constant 0 : index
    %7 = vector.load %arg2[%c1_7, %c0_8, %c0_9] : memref<3x64x128xbf16, #tpu.memory_space<vmem>>, vector<1x64x128xbf16>
    %8 = vector.shape_cast %7 : vector<1x64x128xbf16> to vector<64x128xbf16>
    %cst_10 = arith.constant dense<0.000000e+00> : vector<16x128xf32>
    %9 = tpu.matmul %6, %8, %cst_10 {dimension_numbers = #tpu.dot_dimension_numbers<[1], [0], [0], [1], [0, 0, 1, 1], [], []>} : vector<16x64xbf16>, vector<64x128xbf16>, vector<16x128xf32> -> vector<16x128xf32>
    %10 = arith.addf %4, %9 : vector<16x128xf32>
    %c0_11 = arith.constant 0 : index
    %c2 = arith.constant 2 : index
    %c0_12 = arith.constant 0 : index
    %11 = vector.load %arg1[%c0_11, %c2, %c0_12] : memref<1x18x64xbf16, #tpu.memory_space<vmem>>, vector<1x16x64xbf16>
    %12 = vector.shape_cast %11 : vector<1x16x64xbf16> to vector<16x64xbf16>
    %c2_13 = arith.constant 2 : index
    %c0_14 = arith.constant 0 : index
    %c0_15 = arith.constant 0 : index
    %13 = vector.load %arg2[%c2_13, %c0_14, %c0_15] : memref<3x64x128xbf16, #tpu.memory_space<vmem>>, vector<1x64x128xbf16>
    %14 = vector.shape_cast %13 : vector<1x64x128xbf16> to vector<64x128xbf16>
    %cst_16 = arith.constant dense<0.000000e+00> : vector<16x128xf32>
    %15 = tpu.matmul %12, %14, %cst_16 {dimension_numbers = #tpu.dot_dimension_numbers<[1], [0], [0], [1], [0, 0, 1, 1], [], []>} : vector<16x64xbf16>, vector<64x128xbf16>, vector<16x128xf32> -> vector<16x128xf32>
    %16 = arith.addf %10, %15 : vector<16x128xf32>
    %c0_17 = arith.constant 0 : index
    %c0_18 = arith.constant 0 : index
    %c0_19 = arith.constant 0 : index
    %17 = vector.load %arg3[%c0_17, %c0_18, %c0_19] : memref<1x16x128xf32, #tpu.memory_space<vmem>>, vector<1x16x128xf32>
    %18 = vector.shape_cast %17 : vector<1x16x128xf32> to vector<16x128xf32>
    %19 = vector.shape_cast %16 : vector<16x128xf32> to vector<1x16x128xf32>
    tpu.vector_store %arg3[%c0_17, %c0_18, %c0_19], %19 {strides = array<i32>} : memref<1x16x128xf32, #tpu.memory_space<vmem>>, vector<1x16x128xf32>,
    %cst_20 = arith.constant dense<0.000000e+00> : vector<128xf32>
    %20 = vector.multi_reduction <add>, %16, %cst_20 [0] : vector<16x128xf32> to vector<128xf32>
    %21 = vector.shape_cast %20 : vector<128xf32> to vector<1x128xf32>
    %c0_21 = arith.constant 0 : index
    %c0_22 = arith.constant 0 : index
    %c0_23 = arith.constant 0 : index
    %22 = vector.load %arg4[%c0_21, %c0_22, %c0_23] : memref<1x2x128xf32, #tpu.memory_space<vmem>>, vector<1x1x128xf32>
    %23 = vector.shape_cast %22 : vector<1x1x128xf32> to vector<1x128xf32>
    %24 = vector.shape_cast %21 : vector<1x128xf32> to vector<1x1x128xf32>
    tpu.vector_store %arg4[%c0_21, %c0_22, %c0_23], %24 {strides = array<i32>} : memref<1x2x128xf32, #tpu.memory_space<vmem>>, vector<1x1x128xf32>,
    %25 = arith.mulf %16, %16 : vector<16x128xf32>
    %cst_24 = arith.constant dense<0.000000e+00> : vector<128xf32>
    %26 = vector.multi_reduction <add>, %25, %cst_24 [0] : vector<16x128xf32> to vector<128xf32>
    %27 = vector.shape_cast %26 : vector<128xf32> to vector<1x128xf32>
    %c0_25 = arith.constant 0 : index
    %c1_26 = arith.constant 1 : index
    %c0_27 = arith.constant 0 : index
    %28 = vector.load %arg4[%c0_25, %c1_26, %c0_27] : memref<1x2x128xf32, #tpu.memory_space<vmem>>, vector<1x1x128xf32>
    %29 = vector.shape_cast %28 : vector<1x1x128xf32> to vector<1x128xf32>
    %30 = vector.shape_cast %27 : vector<1x128xf32> to vector<1x1x128xf32>
    tpu.vector_store %arg4[%c0_25, %c1_26, %c0_27], %30 {strides = array<i32>} : memref<1x2x128xf32, #tpu.memory_space<vmem>>, vector<1x1x128xf32>,
    return
  }
  func.func @transform_0(%arg0: i32) -> (i32, i32, i32) {
    %c0_i32 = arith.constant 0 : i32
    %c0_i32_0 = arith.constant 0 : i32
    %c0_i32_1 = arith.constant 0 : i32
    return %arg0, %c0_i32, %c0_i32_0 : i32, i32, i32
  }
  func.func @transform_1(%arg0: i32) -> (i32, i32, i32) {
    %c0_i32 = arith.constant 0 : i32
    %c0_i32_0 = arith.constant 0 : i32
    %c0_i32_1 = arith.constant 0 : i32
    %c0_i32_2 = arith.constant 0 : i32
    return %c0_i32, %c0_i32_0, %c0_i32_1 : i32, i32, i32
  }
  func.func @transform_2(%arg0: i32) -> (i32, i32, i32) {
    %c0_i32 = arith.constant 0 : i32
    %c0_i32_0 = arith.constant 0 : i32
    %c0_i32_1 = arith.constant 0 : i32
    return %arg0, %c0_i32, %c0_i32_0 : i32, i32, i32
  }
  func.func @transform_3(%arg0: i32) -> (i32, i32, i32) {
    %c0_i32 = arith.constant 0 : i32
    %c0_i32_0 = arith.constant 0 : i32
    %c0_i32_1 = arith.constant 0 : i32
    return %arg0, %c0_i32, %c0_i32_0 : i32, i32, i32
  }
}

module attributes {stable_mosaic.version = 11 : i64} {
  func.func @_bn_relu_conv_stats_kernel(%arg0: i32, %arg1: memref<1x16x128xf32, #tpu.memory_space<vmem>>, %arg2: memref<3x128x128xbf16, #tpu.memory_space<vmem>>, %arg3: memref<1x128xf32, #tpu.memory_space<vmem>>, %arg4: memref<1x128xf32, #tpu.memory_space<vmem>>, %arg5: memref<1x16x128xf32, #tpu.memory_space<vmem>>, %arg6: memref<1x2x128xf32, #tpu.memory_space<vmem>>, %arg7: memref<18x128xf32, #tpu.memory_space<vmem>>) attributes {dimension_semantics = [#tpu.dimension_semantics<parallel>], iteration_bounds = array<i64: 2>, scalar_prefetch = 0 : i64, scratch_operands = 1 : i64, tpu.core_type = #tpu.core_type<tc>, window_params = [{transform_indices = @transform_0, window_bounds = array<i64: 1, 16, 128>}, {pipeline_mode = #tpu.pipeline_mode<synchronous>, transform_indices = @transform_1, window_bounds = array<i64: 3, 128, 128>}, {pipeline_mode = #tpu.pipeline_mode<synchronous>, transform_indices = @transform_2, window_bounds = array<i64: 1, 128>}, {pipeline_mode = #tpu.pipeline_mode<synchronous>, transform_indices = @transform_3, window_bounds = array<i64: 1, 128>}, {transform_indices = @transform_4, window_bounds = array<i64: 1, 16, 128>}, {transform_indices = @transform_5, window_bounds = array<i64: 1, 2, 128>}]} {
    %c0 = arith.constant 0 : index
    %c0_0 = arith.constant 0 : index
    %c0_1 = arith.constant 0 : index
    %0 = vector.load %arg1[%c0, %c0_0, %c0_1] : memref<1x16x128xf32, #tpu.memory_space<vmem>>, vector<1x16x128xf32>
    %1 = vector.shape_cast %0 : vector<1x16x128xf32> to vector<16x128xf32>
    %c0_2 = arith.constant 0 : index
    %c0_3 = arith.constant 0 : index
    %2 = vector.load %arg3[%c0_2, %c0_3] : memref<1x128xf32, #tpu.memory_space<vmem>>, vector<1x128xf32>
    %3 = vector.broadcast %2 : vector<1x128xf32> to vector<16x128xf32>
    %4 = arith.mulf %1, %3 : vector<16x128xf32>
    %c0_4 = arith.constant 0 : index
    %c0_5 = arith.constant 0 : index
    %5 = vector.load %arg4[%c0_4, %c0_5] : memref<1x128xf32, #tpu.memory_space<vmem>>, vector<1x128xf32>
    %6 = vector.broadcast %5 : vector<1x128xf32> to vector<16x128xf32>
    %7 = arith.addf %4, %6 : vector<16x128xf32>
    %cst = arith.constant 0.000000e+00 : f32
    %8 = vector.broadcast %cst : f32 to vector<16x128xf32>
    %9 = arith.maximumf %7, %8 : vector<16x128xf32>
    %cst_6 = arith.constant 0.000000e+00 : f32
    %10 = vector.broadcast %cst_6 : f32 to vector<1x128xf32>
    %c0_7 = arith.constant 0 : index
    %c0_8 = arith.constant 0 : index
    %11 = vector.load %arg7[%c0_7, %c0_8] : memref<18x128xf32, #tpu.memory_space<vmem>>, vector<1x128xf32>
    tpu.vector_store %arg7[%c0_7, %c0_8], %10 {strides = array<i32>} : memref<18x128xf32, #tpu.memory_space<vmem>>, vector<1x128xf32>,
    %cst_9 = arith.constant 0.000000e+00 : f32
    %12 = vector.broadcast %cst_9 : f32 to vector<1x128xf32>
    %c17 = arith.constant 17 : index
    %c0_10 = arith.constant 0 : index
    %13 = vector.load %arg7[%c17, %c0_10] : memref<18x128xf32, #tpu.memory_space<vmem>>, vector<1x128xf32>
    tpu.vector_store %arg7[%c17, %c0_10], %12 {strides = array<i32>} : memref<18x128xf32, #tpu.memory_space<vmem>>, vector<1x128xf32>,
    %c1 = arith.constant 1 : index
    %c0_11 = arith.constant 0 : index
    %14 = vector.load %arg7[%c1, %c0_11] : memref<18x128xf32, #tpu.memory_space<vmem>>, vector<16x128xf32>
    tpu.vector_store %arg7[%c1, %c0_11], %9 {strides = array<i32>} : memref<18x128xf32, #tpu.memory_space<vmem>>, vector<16x128xf32>,
    %c0_12 = arith.constant 0 : index
    %c0_13 = arith.constant 0 : index
    %15 = vector.load %arg7[%c0_12, %c0_13] : memref<18x128xf32, #tpu.memory_space<vmem>>, vector<16x128xf32>
    %16 = arith.truncf %15 : vector<16x128xf32> to vector<16x128xbf16>
    %c0_14 = arith.constant 0 : index
    %c0_15 = arith.constant 0 : index
    %c0_16 = arith.constant 0 : index
    %17 = vector.load %arg2[%c0_14, %c0_15, %c0_16] : memref<3x128x128xbf16, #tpu.memory_space<vmem>>, vector<1x128x128xbf16>
    %18 = vector.shape_cast %17 : vector<1x128x128xbf16> to vector<128x128xbf16>
    %cst_17 = arith.constant dense<0.000000e+00> : vector<16x128xf32>
    %19 = tpu.matmul %16, %18, %cst_17 {dimension_numbers = #tpu.dot_dimension_numbers<[1], [0], [0], [1], [0, 0, 1, 1], [], []>} : vector<16x128xbf16>, vector<128x128xbf16>, vector<16x128xf32> -> vector<16x128xf32>
    %c1_18 = arith.constant 1 : index
    %c0_19 = arith.constant 0 : index
    %20 = vector.load %arg7[%c1_18, %c0_19] : memref<18x128xf32, #tpu.memory_space<vmem>>, vector<16x128xf32>
    %21 = arith.truncf %20 : vector<16x128xf32> to vector<16x128xbf16>
    %c1_20 = arith.constant 1 : index
    %c0_21 = arith.constant 0 : index
    %c0_22 = arith.constant 0 : index
    %22 = vector.load %arg2[%c1_20, %c0_21, %c0_22] : memref<3x128x128xbf16, #tpu.memory_space<vmem>>, vector<1x128x128xbf16>
    %23 = vector.shape_cast %22 : vector<1x128x128xbf16> to vector<128x128xbf16>
    %cst_23 = arith.constant dense<0.000000e+00> : vector<16x128xf32>
    %24 = tpu.matmul %21, %23, %cst_23 {dimension_numbers = #tpu.dot_dimension_numbers<[1], [0], [0], [1], [0, 0, 1, 1], [], []>} : vector<16x128xbf16>, vector<128x128xbf16>, vector<16x128xf32> -> vector<16x128xf32>
    %25 = arith.addf %19, %24 : vector<16x128xf32>
    %c2 = arith.constant 2 : index
    %c0_24 = arith.constant 0 : index
    %26 = vector.load %arg7[%c2, %c0_24] : memref<18x128xf32, #tpu.memory_space<vmem>>, vector<16x128xf32>
    %27 = arith.truncf %26 : vector<16x128xf32> to vector<16x128xbf16>
    %c2_25 = arith.constant 2 : index
    %c0_26 = arith.constant 0 : index
    %c0_27 = arith.constant 0 : index
    %28 = vector.load %arg2[%c2_25, %c0_26, %c0_27] : memref<3x128x128xbf16, #tpu.memory_space<vmem>>, vector<1x128x128xbf16>
    %29 = vector.shape_cast %28 : vector<1x128x128xbf16> to vector<128x128xbf16>
    %cst_28 = arith.constant dense<0.000000e+00> : vector<16x128xf32>
    %30 = tpu.matmul %27, %29, %cst_28 {dimension_numbers = #tpu.dot_dimension_numbers<[1], [0], [0], [1], [0, 0, 1, 1], [], []>} : vector<16x128xbf16>, vector<128x128xbf16>, vector<16x128xf32> -> vector<16x128xf32>
    %31 = arith.addf %25, %30 : vector<16x128xf32>
    %c0_29 = arith.constant 0 : index
    %c0_30 = arith.constant 0 : index
    %c0_31 = arith.constant 0 : index
    %32 = vector.load %arg5[%c0_29, %c0_30, %c0_31] : memref<1x16x128xf32, #tpu.memory_space<vmem>>, vector<1x16x128xf32>
    %33 = vector.shape_cast %32 : vector<1x16x128xf32> to vector<16x128xf32>
    %34 = vector.shape_cast %31 : vector<16x128xf32> to vector<1x16x128xf32>
    tpu.vector_store %arg5[%c0_29, %c0_30, %c0_31], %34 {strides = array<i32>} : memref<1x16x128xf32, #tpu.memory_space<vmem>>, vector<1x16x128xf32>,
    %cst_32 = arith.constant dense<0.000000e+00> : vector<128xf32>
    %35 = vector.multi_reduction <add>, %31, %cst_32 [0] : vector<16x128xf32> to vector<128xf32>
    %36 = vector.shape_cast %35 : vector<128xf32> to vector<1x128xf32>
    %c0_33 = arith.constant 0 : index
    %c0_34 = arith.constant 0 : index
    %c0_35 = arith.constant 0 : index
    %37 = vector.load %arg6[%c0_33, %c0_34, %c0_35] : memref<1x2x128xf32, #tpu.memory_space<vmem>>, vector<1x1x128xf32>
    %38 = vector.shape_cast %37 : vector<1x1x128xf32> to vector<1x128xf32>
    %39 = vector.shape_cast %36 : vector<1x128xf32> to vector<1x1x128xf32>
    tpu.vector_store %arg6[%c0_33, %c0_34, %c0_35], %39 {strides = array<i32>} : memref<1x2x128xf32, #tpu.memory_space<vmem>>, vector<1x1x128xf32>,
    %40 = arith.mulf %31, %31 : vector<16x128xf32>
    %cst_36 = arith.constant dense<0.000000e+00> : vector<128xf32>
    %41 = vector.multi_reduction <add>, %40, %cst_36 [0] : vector<16x128xf32> to vector<128xf32>
    %42 = vector.shape_cast %41 : vector<128xf32> to vector<1x128xf32>
    %c0_37 = arith.constant 0 : index
    %c1_38 = arith.constant 1 : index
    %c0_39 = arith.constant 0 : index
    %43 = vector.load %arg6[%c0_37, %c1_38, %c0_39] : memref<1x2x128xf32, #tpu.memory_space<vmem>>, vector<1x1x128xf32>
    %44 = vector.shape_cast %43 : vector<1x1x128xf32> to vector<1x128xf32>
    %45 = vector.shape_cast %42 : vector<1x128xf32> to vector<1x1x128xf32>
    tpu.vector_store %arg6[%c0_37, %c1_38, %c0_39], %45 {strides = array<i32>} : memref<1x2x128xf32, #tpu.memory_space<vmem>>, vector<1x1x128xf32>,
    return
  }
  func.func @transform_0(%arg0: i32) -> (i32, i32, i32) {
    %c0_i32 = arith.constant 0 : i32
    %c0_i32_0 = arith.constant 0 : i32
    %c0_i32_1 = arith.constant 0 : i32
    return %arg0, %c0_i32, %c0_i32_0 : i32, i32, i32
  }
  func.func @transform_1(%arg0: i32) -> (i32, i32, i32) {
    %c0_i32 = arith.constant 0 : i32
    %c0_i32_0 = arith.constant 0 : i32
    %c0_i32_1 = arith.constant 0 : i32
    %c0_i32_2 = arith.constant 0 : i32
    return %c0_i32, %c0_i32_0, %c0_i32_1 : i32, i32, i32
  }
  func.func @transform_2(%arg0: i32) -> (i32, i32) {
    %c0_i32 = arith.constant 0 : i32
    %c0_i32_0 = arith.constant 0 : i32
    %c0_i32_1 = arith.constant 0 : i32
    return %c0_i32, %c0_i32_0 : i32, i32
  }
  func.func @transform_3(%arg0: i32) -> (i32, i32) {
    %c0_i32 = arith.constant 0 : i32
    %c0_i32_0 = arith.constant 0 : i32
    %c0_i32_1 = arith.constant 0 : i32
    return %c0_i32, %c0_i32_0 : i32, i32
  }
  func.func @transform_4(%arg0: i32) -> (i32, i32, i32) {
    %c0_i32 = arith.constant 0 : i32
    %c0_i32_0 = arith.constant 0 : i32
    %c0_i32_1 = arith.constant 0 : i32
    return %arg0, %c0_i32, %c0_i32_0 : i32, i32, i32
  }
  func.func @transform_5(%arg0: i32) -> (i32, i32, i32) {
    %c0_i32 = arith.constant 0 : i32
    %c0_i32_0 = arith.constant 0 : i32
    %c0_i32_1 = arith.constant 0 : i32
    return %arg0, %c0_i32, %c0_i32_0 : i32, i32, i32
  }
}

module attributes {stable_mosaic.version = 11 : i64} {
  func.func @_bn_add_relu_kernel(%arg0: i32, %arg1: memref<1x16x128xf32, #tpu.memory_space<vmem>>, %arg2: memref<1x16x128xf32, #tpu.memory_space<vmem>>, %arg3: memref<1x128xf32, #tpu.memory_space<vmem>>, %arg4: memref<1x128xf32, #tpu.memory_space<vmem>>, %arg5: memref<1x128xf32, #tpu.memory_space<vmem>>, %arg6: memref<1x128xf32, #tpu.memory_space<vmem>>, %arg7: memref<1x16x128xf32, #tpu.memory_space<vmem>>) attributes {dimension_semantics = [#tpu.dimension_semantics<parallel>], iteration_bounds = array<i64: 2>, scalar_prefetch = 0 : i64, scratch_operands = 0 : i64, tpu.core_type = #tpu.core_type<tc>, window_params = [{transform_indices = @transform_0, window_bounds = array<i64: 1, 16, 128>}, {transform_indices = @transform_1, window_bounds = array<i64: 1, 16, 128>}, {pipeline_mode = #tpu.pipeline_mode<synchronous>, transform_indices = @transform_2, window_bounds = array<i64: 1, 128>}, {pipeline_mode = #tpu.pipeline_mode<synchronous>, transform_indices = @transform_3, window_bounds = array<i64: 1, 128>}, {pipeline_mode = #tpu.pipeline_mode<synchronous>, transform_indices = @transform_4, window_bounds = array<i64: 1, 128>}, {pipeline_mode = #tpu.pipeline_mode<synchronous>, transform_indices = @transform_5, window_bounds = array<i64: 1, 128>}, {transform_indices = @transform_6, window_bounds = array<i64: 1, 16, 128>}]} {
    %c0 = arith.constant 0 : index
    %c0_0 = arith.constant 0 : index
    %c0_1 = arith.constant 0 : index
    %0 = vector.load %arg1[%c0, %c0_0, %c0_1] : memref<1x16x128xf32, #tpu.memory_space<vmem>>, vector<1x16x128xf32>
    %1 = vector.shape_cast %0 : vector<1x16x128xf32> to vector<16x128xf32>
    %c0_2 = arith.constant 0 : index
    %c0_3 = arith.constant 0 : index
    %2 = vector.load %arg3[%c0_2, %c0_3] : memref<1x128xf32, #tpu.memory_space<vmem>>, vector<1x128xf32>
    %3 = vector.broadcast %2 : vector<1x128xf32> to vector<16x128xf32>
    %4 = arith.mulf %1, %3 : vector<16x128xf32>
    %c0_4 = arith.constant 0 : index
    %c0_5 = arith.constant 0 : index
    %5 = vector.load %arg4[%c0_4, %c0_5] : memref<1x128xf32, #tpu.memory_space<vmem>>, vector<1x128xf32>
    %6 = vector.broadcast %5 : vector<1x128xf32> to vector<16x128xf32>
    %7 = arith.addf %4, %6 : vector<16x128xf32>
    %c0_6 = arith.constant 0 : index
    %c0_7 = arith.constant 0 : index
    %c0_8 = arith.constant 0 : index
    %8 = vector.load %arg2[%c0_6, %c0_7, %c0_8] : memref<1x16x128xf32, #tpu.memory_space<vmem>>, vector<1x16x128xf32>
    %9 = vector.shape_cast %8 : vector<1x16x128xf32> to vector<16x128xf32>
    %c0_9 = arith.constant 0 : index
    %c0_10 = arith.constant 0 : index
    %10 = vector.load %arg5[%c0_9, %c0_10] : memref<1x128xf32, #tpu.memory_space<vmem>>, vector<1x128xf32>
    %11 = vector.broadcast %10 : vector<1x128xf32> to vector<16x128xf32>
    %12 = arith.mulf %9, %11 : vector<16x128xf32>
    %13 = arith.addf %7, %12 : vector<16x128xf32>
    %c0_11 = arith.constant 0 : index
    %c0_12 = arith.constant 0 : index
    %14 = vector.load %arg6[%c0_11, %c0_12] : memref<1x128xf32, #tpu.memory_space<vmem>>, vector<1x128xf32>
    %15 = vector.broadcast %14 : vector<1x128xf32> to vector<16x128xf32>
    %16 = arith.addf %13, %15 : vector<16x128xf32>
    %cst = arith.constant 0.000000e+00 : f32
    %17 = vector.broadcast %cst : f32 to vector<16x128xf32>
    %18 = arith.maximumf %16, %17 : vector<16x128xf32>
    %c0_13 = arith.constant 0 : index
    %c0_14 = arith.constant 0 : index
    %c0_15 = arith.constant 0 : index
    %19 = vector.load %arg7[%c0_13, %c0_14, %c0_15] : memref<1x16x128xf32, #tpu.memory_space<vmem>>, vector<1x16x128xf32>
    %20 = vector.shape_cast %19 : vector<1x16x128xf32> to vector<16x128xf32>
    %21 = vector.shape_cast %18 : vector<16x128xf32> to vector<1x16x128xf32>
    tpu.vector_store %arg7[%c0_13, %c0_14, %c0_15], %21 {strides = array<i32>} : memref<1x16x128xf32, #tpu.memory_space<vmem>>, vector<1x16x128xf32>,
    return
  }
  func.func @transform_0(%arg0: i32) -> (i32, i32, i32) {
    %c0_i32 = arith.constant 0 : i32
    %c0_i32_0 = arith.constant 0 : i32
    %c0_i32_1 = arith.constant 0 : i32
    return %arg0, %c0_i32, %c0_i32_0 : i32, i32, i32
  }
  func.func @transform_1(%arg0: i32) -> (i32, i32, i32) {
    %c0_i32 = arith.constant 0 : i32
    %c0_i32_0 = arith.constant 0 : i32
    %c0_i32_1 = arith.constant 0 : i32
    return %arg0, %c0_i32, %c0_i32_0 : i32, i32, i32
  }
  func.func @transform_2(%arg0: i32) -> (i32, i32) {
    %c0_i32 = arith.constant 0 : i32
    %c0_i32_0 = arith.constant 0 : i32
    %c0_i32_1 = arith.constant 0 : i32
    return %c0_i32, %c0_i32_0 : i32, i32
  }
  func.func @transform_3(%arg0: i32) -> (i32, i32) {
    %c0_i32 = arith.constant 0 : i32
    %c0_i32_0 = arith.constant 0 : i32
    %c0_i32_1 = arith.constant 0 : i32
    return %c0_i32, %c0_i32_0 : i32, i32
  }
  func.func @transform_4(%arg0: i32) -> (i32, i32) {
    %c0_i32 = arith.constant 0 : i32
    %c0_i32_0 = arith.constant 0 : i32
    %c0_i32_1 = arith.constant 0 : i32
    return %c0_i32, %c0_i32_0 : i32, i32
  }
  func.func @transform_5(%arg0: i32) -> (i32, i32) {
    %c0_i32 = arith.constant 0 : i32
    %c0_i32_0 = arith.constant 0 : i32
    %c0_i32_1 = arith.constant 0 : i32
    return %c0_i32, %c0_i32_0 : i32, i32
  }
  func.func @transform_6(%arg0: i32) -> (i32, i32, i32) {
    %c0_i32 = arith.constant 0 : i32
    %c0_i32_0 = arith.constant 0 : i32
    %c0_i32_1 = arith.constant 0 : i32
    return %arg0, %c0_i32, %c0_i32_0 : i32, i32, i32
  }
}

</mosaic_0001>

<llo_original>
// kernel: tile.23
$region0: #{tile.23}
  #allocation0 [shape = 's32[1]{0}', space=sflag, size = 0x4, scoped, tag = 'scoped memory for tile.23']
  %s0 = inlined_call_operand.vmem [shape: f32[8], index: 0, kind: input, shape index: {}]
  %s1 = inlined_call_operand.vmem [shape: f32[16,8], index: 1, kind: output, shape index: {}]
  // Predicated region
  $region2: #{tile.23} parent=0 // pred_check
    _
  $region3: #{tile.23} parent=0 // pred_check_branch
    %3 = sbr.rel (0) target = $region5
  $region4: #{tile.23} parent=0 // pred_region
    _
  $region5: #{tile.23} parent=0 // pred_fallthru
    _
  %v4 = vld [vmem:[%s0] ss:$0 sm:$0xff]
  %5 = vst [vmem:[%s1] sm:$0xff] %v4
  %s6 = scalar_lea.vmem %s1, 8
  %7 = vst [vmem:[%s6] sm:$0xff] %v4

// kernel: tile.24
$region0: #{tile.24}
  %s0 = inlined_call_operand.vmem [shape: f32[16,8], index: 0, kind: input, shape index: {}]
  %s1 = inlined_call_operand.vmem [shape: f32[1,128], index: 1, kind: output, shape index: {}]
  $region1: #{tile.24} parent=0
    #allocation0 [shape = 'u8[4096]{0}', space=vmem, size = 0x1000, scoped, tag = 'scoped mem for output reshape']
    %v2 = vld [vmem:[%s0] sm:$0x1]
    %vm3 = vcmask 64512
    %4 = vst.msk [vmem:[#allocation0] sm:$0x1] %vm3, %v2
    %s5 = scalar_lea.vmem %s0, 15
    %v6 = vld [vmem:[%s5] sm:$0x1]
    %7 = vrot.lane.b32.xlu0 %v6, 120
    %v8 = vpop.permute.xlu0 %7
    %vm9 = vcmask 1048512
    %10 = vst.msk [vmem:[#allocation0] sm:$0x1] %vm9, %v8
    %s11 = scalar_lea.vmem %s0, 14
    %v12 = vld [vmem:[%s11] sm:$0x1]
    %13 = vrot.lane.b32.xlu0 %v12, 112
    %v14 = vpop.permute.xlu0 %13
    %vm15 = vcmask 982912
    %16 = vst.msk [vmem:[#allocation0] sm:$0x1] %vm15, %v14
    %s17 = scalar_lea.vmem %s0, 13
    %v18 = vld [vmem:[%s17] sm:$0x1]
    %19 = vrot.lane.b32.xlu0 %v18, 104
    %v20 = vpop.permute.xlu0 %19
    %vm21 = vcmask 917312
    %22 = vst.msk [vmem:[#allocation0] sm:$0x1] %vm21, %v20
    %s23 = scalar_lea.vmem %s0, 12
    %v24 = vld [vmem:[%s23] sm:$0x1]
    %25 = vrot.lane.b32.xlu0 %v24, 96
    %v26 = vpop.permute.xlu0 %25
    %vm27 = vcmask 851712
    %28 = vst.msk [vmem:[#allocation0] sm:$0x1] %vm27, %v26
    %s29 = scalar_lea.vmem %s0, 11
    %v30 = vld [vmem:[%s29] sm:$0x1]
    %31 = vrot.lane.b32.xlu0 %v30, 88
    %v32 = vpop.permute.xlu0 %31
    %vm33 = vcmask 786112
    %34 = vst.msk [vmem:[#allocation0] sm:$0x1] %vm33, %v32
    %s35 = scalar_lea.vmem %s0, 10
    %v36 = vld [vmem:[%s35] sm:$0x1]
    %37 = vrot.lane.b32.xlu0 %v36, 80
    %v38 = vpop.permute.xlu0 %37
    %vm39 = vcmask 720512
    %40 = vst.msk [vmem:[#allocation0] sm:$0x1] %vm39, %v38
    %s41 = scalar_lea.vmem %s0, 9
    %v42 = vld [vmem:[%s41] sm:$0x1]
    %43 = vrot.lane.b32.xlu0 %v42, 72
    %v44 = vpop.permute.xlu0 %43
    %vm45 = vcmask 654912
    %46 = vst.msk [vmem:[#allocation0] sm:$0x1] %vm45, %v44
    %s47 = scalar_lea.vmem %s0, 8
    %v48 = vld [vmem:[%s47] sm:$0x1]
    %49 = vrot.lane.b32.xlu0 %v48, 64
    %v50 = vpop.permute.xlu0 %49
    %vm51 = vcmask 589312
    %52 = vst.msk [vmem:[#allocation0] sm:$0x1] %vm51, %v50
    %s53 = scalar_lea.vmem %s0, 7
    %v54 = vld [vmem:[%s53] sm:$0x1]
    %55 = vrot.lane.b32.xlu0 %v54, 56
    %v56 = vpop.permute.xlu0 %55
    %vm57 = vcmask 523712
    %58 = vst.msk [vmem:[#allocation0] sm:$0x1] %vm57, %v56
    %s59 = scalar_lea.vmem %s0, 6
    %v60 = vld [vmem:[%s59] sm:$0x1]
    %61 = vrot.lane.b32.xlu0 %v60, 48
    %v62 = vpop.permute.xlu0 %61
    %vm63 = vcmask 458112
    %64 = vst.msk [vmem:[#allocation0] sm:$0x1] %vm63, %v62
    %s65 = scalar_lea.vmem %s0, 5
    %v66 = vld [vmem:[%s65] sm:$0x1]
    %67 = vrot.lane.b32.xlu0 %v66, 40
    %v68 = vpop.permute.xlu0 %67
    %vm69 = vcmask 392512
    %70 = vst.msk [vmem:[#allocation0] sm:$0x1] %vm69, %v68
    %s71 = scalar_lea.vmem %s0, 4
    %v72 = vld [vmem:[%s71] sm:$0x1]
    %73 = vrot.lane.b32.xlu0 %v72, 32
    %v74 = vpop.permute.xlu0 %73
    %vm75 = vcmask 326912
    %76 = vst.msk [vmem:[#allocation0] sm:$0x1] %vm75, %v74
    %s77 = scalar_lea.vmem %s0, 3
    %v78 = vld [vmem:[%s77] sm:$0x1]
    %79 = vrot.lane.b32.xlu0 %v78, 24
    %v80 = vpop.permute.xlu0 %79
    %vm81 = vcmask 261312
    %82 = vst.msk [vmem:[#allocation0] sm:$0x1] %vm81, %v80
    %s83 = scalar_lea.vmem %s0, 2
    %v84 = vld [vmem:[%s83] sm:$0x1]
    %85 = vrot.lane.b32.xlu0 %v84, 16
    %v86 = vpop.permute.xlu0 %85
    %vm87 = vcmask 195712
    %88 = vst.msk [vmem:[#allocation0] sm:$0x1] %vm87, %v86
    %s89 = scalar_lea.vmem %s0, 1
    %v90 = vld [vmem:[%s89] sm:$0x1]
    %91 = vrot.lane.b32.xlu0 %v90, 8
    %v92 = vpop.permute.xlu0 %91
    %vm93 = vcmask 130112
    %94 = vst.msk [vmem:[#allocation0] sm:$0x1] %vm93, %v92
    %s96 = sshllo.u32 0, 1
    %v98 = vld [vmem:[#allocation0] sm:%s96]
    %s99 = sshllo.u32 0, 1
    %100 = vst [vmem:[%s1] sm:%s99] %v98

// kernel: res_block_forward.3
$region0: #{res_block_forward.3}
  #allocation0 [shape = 'u32[]', space=smem, size = 0x4, offset = 0x4, fixed_abs, tag = 'smem constant byte address 0x4 - core index']
  #allocation1 [shape = 'u32[144,128]{1,0:T(1,128)}', space=vmem, size = 0x12000, scoped, tag = 'internal scratch']
  %s0 = inlined_call_operand.vmem [shape: bf16[2,18,64], index: 0, kind: input, shape index: {}]
  %s1 = inlined_call_operand.vmem [shape: bf16[3,64,128], index: 1, kind: input, shape index: {}]
  %s2 = inlined_call_operand.vmem [shape: f32[2,16,128], index: 2, kind: output, shape index: {0}]
  %s3 = inlined_call_operand.vmem [shape: f32[2,2,128], index: 3, kind: output, shape index: {1}]
  %4 = xla_tuple %s2, %s3
  %s5 = sld [smem:[#allocation0]]
  $region49: #{res_block_forward.3} parent=0
    _
  %s7 = ssub.s32 1, %s5
  %s8 = scalar_select 0, %s7, %s5
  loop: start=0, step=1, limit=4
  $region2: #{res_block_forward.3} parent=0 // loop_pre_header
    _
  $region3: #{res_block_forward.3} parent=0 // loop_header
    %s10 = sphi 0, %s14
    %p11 = scmp.ge.s32.totalorder %s10, 4
    %s20 = sphi 0, %s22
    %s23 = sphi 0, %s20
    %s24 = sphi 0, %s23
    %s40 = sphi 0, %s24
    %s44 = sphi 0, %s44
    %s46 = sphi 0, %s44
    %s47 = sphi 0, %s46
    %s61 = sphi 0, %s47
    %s67 = sphi 0, %s69
    %s70 = sphi 0, %s67
    %s71 = sphi 0, %s70
    %s87 = sphi 0, %s71
    %s93 = sphi 0, %s95
    %s96 = sphi 0, %s93
    %s97 = sphi 0, %s96
    %s113 = sphi 0, %s97
  $region4: #{res_block_forward.3} parent=0 // loop_header_branch
    %13 = sbr.rel (%p11) target = $region8
  $region5: #{res_block_forward.3} parent=0 // loop_body
    %s15 = ssub.s32 %s10, 1
    %s16 = ssub.s32 %s10, 2
    %s17 = sadd.s32 %s10, 1
    %s18 = ssub.s32 %s10, %s17
    %p19 = scmp.eq.s32.totalorder %s18, 0
    %s21 = sadd.s32 %s20, 1
    %s22 = scalar_select %p19, %s20, %s21
    %p25 = pneg %p19
    %p26 = scmp.eq.s32.totalorder %s10, 1
    %p27 = por %p25, %p26
    %p28 = scmp.ne.s32.totalorder %s20, %s23
    %p29 = scmp.eq.s32.totalorder %s10, 0
    %p30 = por %p28, %p29
    %p31 = scmp.ne.s32.totalorder %s20, %s23
    %p32 = scmp.eq.s32.totalorder %s15, 1
    %p33 = por %p31, %p32
    %p34 = scmp.ne.s32.totalorder %s23, %s24
    %p35 = scmp.eq.s32.totalorder %s15, 0
    %p36 = por %p34, %p35
    %p37 = scmp.ne.s32.totalorder %s23, %s24
    %p38 = scmp.eq.s32.totalorder %s16, 1
    %p39 = por %p37, %p38
    %p41 = scmp.ne.s32.totalorder %s24, %s40
    %p42 = scmp.eq.s32.totalorder %s16, 0
    %p43 = por %p41, %p42
    %s45 = sadd.s32 %s44, 1
    %p48 = scmp.eq.s32.totalorder %s10, 1
    %p49 = scmp.ne.s32.totalorder %s44, %s46
    %p50 = scmp.eq.s32.totalorder %s10, 0
    %p51 = por %p49, %p50
    %p52 = scmp.ne.s32.totalorder %s44, %s46
    %p53 = scmp.eq.s32.totalorder %s15, 1
    %p54 = por %p52, %p53
    %p55 = scmp.ne.s32.totalorder %s46, %s47
    %p56 = scmp.eq.s32.totalorder %s15, 0
    %p57 = por %p55, %p56
    %p58 = scmp.ne.s32.totalorder %s46, %s47
    %p59 = scmp.eq.s32.totalorder %s16, 1
    %p60 = por %p58, %p59
    %p62 = scmp.ne.s32.totalorder %s47, %s61
    %p63 = scmp.eq.s32.totalorder %s16, 0
    %p64 = por %p62, %p63
    %s65 = ssub.s32 %s10, %s17
    %p66 = scmp.eq.s32.totalorder %s65, 0
    %s68 = sadd.s32 %s67, 1
    %s69 = scalar_select %p66, %s67, %s68
    %p72 = pneg %p66
    %p73 = scmp.eq.s32.totalorder %s10, 1
    %p74 = por %p72, %p73
    %p75 = scmp.ne.s32.totalorder %s67, %s70
    %p76 = scmp.eq.s32.totalorder %s10, 0
    %p77 = por %p75, %p76
    %p78 = scmp.ne.s32.totalorder %s67, %s70
    %p79 = scmp.eq.s32.totalorder %s15, 1
    %p80 = por %p78, %p79
    %p81 = scmp.ne.s32.totalorder %s70, %s71
    %p82 = scmp.eq.s32.totalorder %s15, 0
    %p83 = por %p81, %p82
    %p84 = scmp.ne.s32.totalorder %s70, %s71
    %p85 = scmp.eq.s32.totalorder %s16, 1
    %p86 = por %p84, %p85
    %p88 = scmp.ne.s32.totalorder %s71, %s87
    %p89 = scmp.eq.s32.totalorder %s16, 0
    %p90 = por %p88, %p89
    %s91 = ssub.s32 %s10, %s17
    %p92 = scmp.eq.s32.totalorder %s91, 0
    %s94 = sadd.s32 %s93, 1
    %s95 = scalar_select %p92, %s93, %s94
    %p98 = pneg %p92
    %p99 = scmp.eq.s32.totalorder %s10, 1
    %p100 = por %p98, %p99
    %p101 = scmp.ne.s32.totalorder %s93, %s96
    %p102 = scmp.eq.s32.totalorder %s10, 0
    %p103 = por %p101, %p102
    %p104 = scmp.ne.s32.totalorder %s93, %s96
    %p105 = scmp.eq.s32.totalorder %s15, 1
    %p106 = por %p104, %p105
    %p107 = scmp.ne.s32.totalorder %s96, %s97
    %p108 = scmp.eq.s32.totalorder %s15, 0
    %p109 = por %p107, %p108
    %p110 = scmp.ne.s32.totalorder %s96, %s97
    %p111 = scmp.eq.s32.totalorder %s16, 1
    %p112 = por %p110, %p111
    %p114 = scmp.ne.s32.totalorder %s97, %s113
    %p115 = scmp.eq.s32.totalorder %s16, 0
    %p116 = por %p114, %p115
    %p117 = scmp.le.s32.totalorder 1, %s10
    %p118 = scmp.lt.s32.totalorder %s10, 3
    %p119 = pnand %p117, %p118
    %p120 = pneg %p119
    // Predicated region
    $region9: #{res_block_forward.3} parent=5 // pred_check
      _
    $region10: #{res_block_forward.3} parent=5 // pred_check_branch
      %122 = sbr.rel (%p119) target = $region12
    $region11: #{res_block_forward.3} parent=5 // pred_region
      %s123 = ssub.s32 %s10, 1
      // Predicated region
      $region13: #{res_block_forward.3} parent=11 // pred_check
        %p124 = pneg %p57
      $region14: #{res_block_forward.3} parent=11 // pred_check_branch
        %126 = sbr.rel (%p124) target = $region16
      $region15: #{res_block_forward.3} parent=11 // pred_region
        _
      $region16: #{res_block_forward.3} parent=11 // pred_fallthru
        _
    $region12: #{res_block_forward.3} parent=5 // pred_fallthru
      _
    %p127 = scmp.lt.s32.totalorder %s10, 2
    // Predicated region
    $region17: #{res_block_forward.3} parent=5 // pred_check
      %p128 = pneg %p127
    $region18: #{res_block_forward.3} parent=5 // pred_check_branch
      %130 = sbr.rel (%p128) target = $region20
    $region19: #{res_block_forward.3} parent=5 // pred_region
      // Predicated region
      $region21: #{res_block_forward.3} parent=19 // pred_check
        %p131 = pneg %p30
      $region22: #{res_block_forward.3} parent=19 // pred_check_branch
        %133 = sbr.rel (%p131) target = $region24
      $region23: #{res_block_forward.3} parent=19 // pred_region
        %p134 = scmp.lt.s32.totalorder %s10, 1
        %s135 = scalar_select %p134, %s10, 1
        %s136 = smul.addr %s135, 3
        %s137 = smul.addr %s136, 4
        %s138 = scalar_lea.vmem %s0, %s137
      $region24: #{res_block_forward.3} parent=19 // pred_fallthru
        _
    $region20: #{res_block_forward.3} parent=5 // pred_fallthru
      _
    %p139 = scmp.le.s32.totalorder 1, %s10
    %p140 = scmp.lt.s32.totalorder %s10, 3
    %p141 = pnand %p139, %p140
    %p142 = pneg %p141
    // Predicated region
    $region25: #{res_block_forward.3} parent=5 // pred_check
      _
    $region26: #{res_block_forward.3} parent=5 // pred_check_branch
      %144 = sbr.rel (%p141) target = $region28
    $region27: #{res_block_forward.3} parent=5 // pred_region
      %s145 = ssub.s32 %s10, 1
      %p146 = scmp.lt.s32.totalorder %s15, 1
      %s147 = scalar_select %p146, %s15, 1
      %s148 = smul.addr %s147, 3
      %s149 = smul.addr %s148, 4
      %s150 = scalar_lea.vmem %s0, %s149
      %p151 = pneg %p36
      %p152 = pneg %p33
      %p153 = pneg %p57
      %p154 = pneg %p54
      %p155 = pneg %p83
      %p156 = pneg %p80
      %p157 = scmp.lt.s32.totalorder %s15, 1
      %s158 = scalar_select %p157, %s15, 1
      %s159 = smul.addr %s158, 2
      %s160 = smul.addr %s159, 8
      %s161 = scalar_lea.vmem %s2, %s160
      %p162 = pneg %p109
      %p163 = pneg %p106
      %p164 = scmp.lt.s32.totalorder %s15, 1
      %s165 = scalar_select %p164, %s15, 1
      %s166 = smul.addr %s165, 2
      %s167 = scalar_lea.vmem %s3, %s166
      %p168 = scmp.lt.s32.totalorder %s15, 1
      %s169 = scalar_select %p168, %s15, 1
      %s170 = smul.addr %s169, 3
      %s171 = smul.addr %s170, 4
      %s172 = scalar_lea.vmem %s0, %s171
      %p173 = scmp.lt.s32.totalorder %s15, 1
      %s174 = scalar_select %p173, %s15, 1
      %s175 = smul.addr %s174, 2
      %s176 = smul.addr %s175, 8
      %s177 = scalar_lea.vmem %s2, %s176
      %p178 = scmp.lt.s32.totalorder %s15, 1
      %s179 = scalar_select %p178, %s15, 1
      %s180 = smul.addr %s179, 2
      %s181 = scalar_lea.vmem %s3, %s180
      %v183 = vld [vmem:[%s172] sm:$0xf]
      %v184 = vld [vmem:[%s172 + $0x4] sm:$0xf]
      %v185 = vld [vmem:[%s1] sm:$0xf]
      %v186 = vld [vmem:[%s1 + $0x4] sm:$0xf]
      %v187 = vld [vmem:[%s1 + $0x8] sm:$0xf]
      %v188 = vld [vmem:[%s1 + $0xc] sm:$0xf]
      %v189 = vld [vmem:[%s1 + $0x10] sm:$0xf]
      %v190 = vld [vmem:[%s1 + $0x14] sm:$0xf]
      %v191 = vld [vmem:[%s1 + $0x18] sm:$0xf]
      %v192 = vld [vmem:[%s1 + $0x1c] sm:$0xf]
      %v193 = vld [vmem:[%s172 + $0x8] sm:$0x1]
      %s194 = scalar_lea.vmem %s1, 32
      %v195 = vld [vmem:[%s194] sm:$0xf]
      %v196 = vld [vmem:[%s194 + $0x4] sm:$0xf]
      %v197 = vld [vmem:[%s194 + $0x8] sm:$0xf]
      %v198 = vld [vmem:[%s194 + $0xc] sm:$0xf]
      %v199 = vld [vmem:[%s194 + $0x10] sm:$0xf]
      %v200 = vld [vmem:[%s194 + $0x14] sm:$0xf]
      %v201 = vld [vmem:[%s194 + $0x18] sm:$0xf]
      %v202 = vld [vmem:[%s194 + $0x1c] sm:$0xf]
      %v206 = vunpack.c.l.b16 %v183
      %v207 = vunpack.c.l.b16 %v184
      %v208 = vunpack.c.l.b16 %v193
      %v209 = vpack.c.b16 %v207, %v206
      %v210 = vpack.c.b16 %v208, %v208
      %vm211 = vsmask.f32 7424
      %v213 = vshrl.u32 %v209, 16
      %v215 = vshll.u32 %v209, 16
      %v217 = vrot.slane %v215, 1
      %v218 = vor.u32 %v213, %v217
      %v220 = vshll.u32 %v210, 16
      %v222 = vrot.slane %v220, 1
      %v223 = vsel %vm211, %v218, %v222
      %v232 = vunpack.c.l.b16 %v195
      %v233 = vunpack.c.l.b16 %v196
      %v234 = vunpack.c.l.b16 %v197
      %v235 = vunpack.c.l.b16 %v198
      %v236 = vunpack.c.l.b16 %v199
      %v237 = vunpack.c.l.b16 %v200
      %v238 = vunpack.c.l.b16 %v201
      %v239 = vunpack.c.l.b16 %v202
      %v240 = vpack.c.b16 %v233, %v232
      %v241 = vpack.c.b16 %v235, %v234
      %v242 = vpack.c.b16 %v237, %v236
      %v243 = vpack.c.b16 %v239, %v238
      %vm248 = vcmask 523264
      %v250 = vsel %vm248, %v223, 0
      %252 = vmatprep.subr.bf16.mxu0 0
      %253 = vmatpush1.bf16.msra.mxu0 %v240
      %254 = vmatprep.subr.bf16.mxu0 0
      %255 = vmatpush1.bf16.msra.mxu0 %v241
      %256 = vmatprep.subr.bf16.mxu0 0
      %257 = vmatpush1.bf16.msra.mxu0 %v242
      %258 = vmatprep.subr.bf16.mxu0 0
      %259 = vmatpush1.bf16.msra.mxu0 %v243
      %260 = vmatprep.subr.bf16.mxu0 0
      %261 = vmatpush1.bf16.msra.mxu0 0
      %262 = vmatprep.subr.bf16.mxu0 0
      %263 = vmatpush1.bf16.msra.mxu0 0
      %264 = vmatprep.subr.bf16.mxu0 0
      %265 = vmatpush1.bf16.msra.mxu0 0
      %266 = vmatprep.subr.bf16.mxu0 0
      %267 = vmatpush1.bf16.msra.mxu0 0
      %268 = vmatprep.subr.bf16.mxu0 0
      %269 = vmatpush1.bf16.msra.mxu0 0
      %270 = vmatprep.subr.bf16.mxu0 0
      %271 = vmatpush1.bf16.msra.mxu0 0
      %272 = vmatprep.subr.bf16.mxu0 0
      %273 = vmatpush1.bf16.msra.mxu0 0
      %274 = vmatprep.subr.bf16.mxu0 0
      %275 = vmatpush1.bf16.msra.mxu0 0
      %276 = vmatprep.subr.bf16.mxu0 0
      %277 = vmatpush1.bf16.msra.mxu0 0
      %278 = vmatprep.subr.bf16.mxu0 0
      %279 = vmatpush1.bf16.msra.mxu0 0
      %280 = vmatprep.subr.bf16.mxu0 0
      %281 = vmatpush1.bf16.msra.mxu0 0
      %282 = vmatprep.subr.bf16.mxu0 0
      %283 = vmatpush1.bf16.msra.mxu0 0
      %284 = vmatprep.mubr.bf16.mxu0 0
      %285 = vmatmul.mubr.bf16.gmra.mrb[0].mxu0 %v250
      %v286 = vpop.f32.mrb[0].mxu0
      %v287 = vadd.f32 0.0, %v286
      %v288 = vpop.f32.mrb[0].mxu0
      %v289 = vpop.f32.mrb[0].mxu0
      %v290 = vadd.f32 0.0, %v289
      %v291 = vpop.f32.mrb[0].mxu0
      %292 = vdwg.mxu0
      %v301 = vunpack.c.l.b16 %v185
      %v302 = vunpack.c.l.b16 %v186
      %v303 = vunpack.c.l.b16 %v187
      %v304 = vunpack.c.l.b16 %v188
      %v305 = vunpack.c.l.b16 %v189
      %v306 = vunpack.c.l.b16 %v190
      %v307 = vunpack.c.l.b16 %v191
      %v308 = vunpack.c.l.b16 %v192
      %v309 = vpack.c.b16 %v302, %v301
      %v310 = vpack.c.b16 %v304, %v303
      %v311 = vpack.c.b16 %v306, %v305
      %v312 = vpack.c.b16 %v308, %v307
      %v317 = vsel %vm248, %v209, 0
      %319 = vmatprep.subr.bf16.mxu0 0
      %320 = vmatpush1.bf16.msra.mxu0 %v309
      %321 = vmatprep.subr.bf16.mxu0 0
      %322 = vmatpush1.bf16.msra.mxu0 %v310
      %323 = vmatprep.subr.bf16.mxu0 0
      %324 = vmatpush1.bf16.msra.mxu0 %v311
      %325 = vmatprep.subr.bf16.mxu0 0
      %326 = vmatpush1.bf16.msra.mxu0 %v312
      %327 = vmatprep.subr.bf16.mxu0 0
      %328 = vmatpush1.bf16.msra.mxu0 0
      %329 = vmatprep.subr.bf16.mxu0 0
      %330 = vmatpush1.bf16.msra.mxu0 0
      %331 = vmatprep.subr.bf16.mxu0 0
      %332 = vmatpush1.bf16.msra.mxu0 0
      %333 = vmatprep.subr.bf16.mxu0 0
      %334 = vmatpush1.bf16.msra.mxu0 0
      %335 = vmatprep.subr.bf16.mxu0 0
      %336 = vmatpush1.bf16.msra.mxu0 0
      %337 = vmatprep.subr.bf16.mxu0 0
      %338 = vmatpush1.bf16.msra.mxu0 0
      %339 = vmatprep.subr.bf16.mxu0 0
      %340 = vmatpush1.bf16.msra.mxu0 0
      %341 = vmatprep.subr.bf16.mxu0 0
      %342 = vmatpush1.bf16.msra.mxu0 0
      %343 = vmatprep.subr.bf16.mxu0 0
      %344 = vmatpush1.bf16.msra.mxu0 0
      %345 = vmatprep.subr.bf16.mxu0 0
      %346 = vmatpush1.bf16.msra.mxu0 0
      %347 = vmatprep.subr.bf16.mxu0 0
      %348 = vmatpush1.bf16.msra.mxu0 0
      %349 = vmatprep.subr.bf16.mxu0 0
      %350 = vmatpush1.bf16.msra.mxu0 0
      %351 = vmatprep.mubr.bf16.mxu0 0
      %352 = vmatmul.mubr.bf16.gmra.mrb[0].mxu0 %v317
      %v353 = vpop.f32.mrb[0].mxu0
      %v354 = vadd.f32 %v287, %v353
      %v355 = vpop.f32.mrb[0].mxu0
      %v356 = vpop.f32.mrb[0].mxu0
      %v357 = vadd.f32 %v290, %v356
      %v358 = vpop.f32.mrb[0].mxu0
      %359 = vdwg.mxu0
      %v360 = vld [vmem:[%s172] sm:$0xe]
      %s361 = scalar_lea.vmem %s1, 64
      %v362 = vld [vmem:[%s361] sm:$0xf]
      %v363 = vld [vmem:[%s361 + $0x4] sm:$0xf]
      %v364 = vld [vmem:[%s361 + $0x8] sm:$0xf]
      %v365 = vld [vmem:[%s361 + $0xc] sm:$0xf]
      %v366 = vld [vmem:[%s361 + $0x10] sm:$0xf]
      %v367 = vld [vmem:[%s361 + $0x14] sm:$0xf]
      %v368 = vld [vmem:[%s361 + $0x18] sm:$0xf]
      %v369 = vld [vmem:[%s361 + $0x1c] sm:$0xf]
      %v371 = vunpack.c.l.b16 %v360
      %v372 = vpack.c.b16 %v207, %v371
      %vm373 = vcmask 1046528
      %v374 = vrot.slane %v372, 1
      %v375 = vrot.slane %v210, 1
      %v376 = vsel %vm373, %v374, %v375
      %v385 = vunpack.c.l.b16 %v362
      %v386 = vunpack.c.l.b16 %v363
      %v387 = vunpack.c.l.b16 %v364
      %v388 = vunpack.c.l.b16 %v365
      %v389 = vunpack.c.l.b16 %v366
      %v390 = vunpack.c.l.b16 %v367
      %v391 = vunpack.c.l.b16 %v368
      %v392 = vunpack.c.l.b16 %v369
      %v393 = vpack.c.b16 %v386, %v385
      %v394 = vpack.c.b16 %v388, %v387
      %v395 = vpack.c.b16 %v390, %v389
      %v396 = vpack.c.b16 %v392, %v391
      %v402 = vsel %vm248, %v376, 0
      %404 = vmatprep.subr.bf16.mxu0 0
      %405 = vmatpush1.bf16.msra.mxu0 %v393
      %406 = vmatprep.subr.bf16.mxu0 0
      %407 = vmatpush1.bf16.msra.mxu0 %v394
      %408 = vmatprep.subr.bf16.mxu0 0
      %409 = vmatpush1.bf16.msra.mxu0 %v395
      %410 = vmatprep.subr.bf16.mxu0 0
      %411 = vmatpush1.bf16.msra.mxu0 %v396
      %412 = vmatprep.subr.bf16.mxu0 0
      %413 = vmatpush1.bf16.msra.mxu0 0
      %414 = vmatprep.subr.bf16.mxu0 0
      %415 = vmatpush1.bf16.msra.mxu0 0
      %416 = vmatprep.subr.bf16.mxu0 0
      %417 = vmatpush1.bf16.msra.mxu0 0
      %418 = vmatprep.subr.bf16.mxu0 0
      %419 = vmatpush1.bf16.msra.mxu0 0
      %420 = vmatprep.subr.bf16.mxu0 0
      %421 = vmatpush1.bf16.msra.mxu0 0
      %422 = vmatprep.subr.bf16.mxu0 0
      %423 = vmatpush1.bf16.msra.mxu0 0
      %424 = vmatprep.subr.bf16.mxu0 0
      %425 = vmatpush1.bf16.msra.mxu0 0
      %426 = vmatprep.subr.bf16.mxu0 0
      %427 = vmatpush1.bf16.msra.mxu0 0
      %428 = vmatprep.subr.bf16.mxu0 0
      %429 = vmatpush1.bf16.msra.mxu0 0
      %430 = vmatprep.subr.bf16.mxu0 0
      %431 = vmatpush1.bf16.msra.mxu0 0
      %432 = vmatprep.subr.bf16.mxu0 0
      %433 = vmatpush1.bf16.msra.mxu0 0
      %434 = vmatprep.subr.bf16.mxu0 0
      %435 = vmatpush1.bf16.msra.mxu0 0
      %436 = vmatprep.mubr.bf16.mxu0 0
      %437 = vmatmul.mubr.bf16.gmra.mrb[0].mxu0 %v402
      %v438 = vpop.f32.mrb[0].mxu0
      %v439 = vadd.f32 0.0, %v438
      %v440 = vpop.f32.mrb[0].mxu0
      %v441 = vpop.f32.mrb[0].mxu0
      %v442 = vadd.f32 0.0, %v441
      %v443 = vpop.f32.mrb[0].mxu0
      %444 = vdwg.mxu0
      %v445 = vadd.f32 %v354, %v439
      %v446 = vadd.f32 %v357, %v442
      %447 = vst [vmem:[%s177] sm:$0xff] %v445
      %448 = vst [vmem:[%s177 + $0x8] sm:$0xff] %v446
      %v449 = vadd.f32 %v445, %v446
      %v450 = vrot.slane %v449, 4
      %v451 = vadd.f32 %v449, %v450
      %v452 = vrot.slane %v451, 2
      %v453 = vadd.f32 %v451, %v452
      %v454 = vrot.slane %v453, 1
      %v455 = vadd.f32 %v453, %v454
      %456 = vst [vmem:[%s181] sm:$0x1] %v455
      %v457 = vmul.f32 %v445, %v445
      %v458 = vmul.f32 %v446, %v446
      %v459 = vadd.f32 %v457, %v458
      %v460 = vrot.slane %v459, 4
      %v461 = vadd.f32 %v459, %v460
      %v462 = vrot.slane %v461, 2
      %v463 = vadd.f32 %v461, %v462
      %v464 = vrot.slane %v463, 1
      %v465 = vadd.f32 %v463, %v464
      %466 = vst [vmem:[%s181 + $0x1] sm:$0x1] %v465
      %p467 = scmp.lt.s32.totalorder %s15, 1
      %s468 = scalar_select %p467, %s15, 1
      %s469 = smul.addr %s468, 2
      %s470 = smul.addr %s469, 8
      %s471 = scalar_lea.vmem %s2, %s470
      %p472 = scmp.lt.s32.totalorder %s15, 1
      %s473 = scalar_select %p472, %s15, 1
      %s474 = smul.addr %s473, 2
      %s475 = scalar_lea.vmem %s3, %s474
      // Predicated region
      $region29: #{res_block_forward.3} parent=27 // pred_check
        %p476 = pneg %p80
      $region30: #{res_block_forward.3} parent=27 // pred_check_branch
        %478 = sbr.rel (%p476) target = $region32
      $region31: #{res_block_forward.3} parent=27 // pred_region
        _
      $region32: #{res_block_forward.3} parent=27 // pred_fallthru
        _
      // Predicated region
      $region33: #{res_block_forward.3} parent=27 // pred_check
        %p479 = pneg %p106
      $region34: #{res_block_forward.3} parent=27 // pred_check_branch
        %481 = sbr.rel (%p479) target = $region36
      $region35: #{res_block_forward.3} parent=27 // pred_region
        _
      $region36: #{res_block_forward.3} parent=27 // pred_fallthru
        _
    $region28: #{res_block_forward.3} parent=5 // pred_fallthru
      _
    %p482 = scmp.le.s32.totalorder 2, %s10
    // Predicated region
    $region37: #{res_block_forward.3} parent=5 // pred_check
      %p483 = pneg %p482
    $region38: #{res_block_forward.3} parent=5 // pred_check_branch
      %485 = sbr.rel (%p483) target = $region40
    $region39: #{res_block_forward.3} parent=5 // pred_region
      %s486 = ssub.s32 %s10, 2
      // Predicated region
      $region41: #{res_block_forward.3} parent=39 // pred_check
        %p487 = pneg %p86
      $region42: #{res_block_forward.3} parent=39 // pred_check_branch
        %489 = sbr.rel (%p487) target = $region44
      $region43: #{res_block_forward.3} parent=39 // pred_region
        %p490 = scmp.lt.s32.totalorder %s16, 1
        %s491 = scalar_select %p490, %s16, 1
        %s492 = smul.addr %s491, 2
        %s493 = smul.addr %s492, 8
        %s494 = scalar_lea.vmem %s2, %s493
      $region44: #{res_block_forward.3} parent=39 // pred_fallthru
        _
      // Predicated region
      $region45: #{res_block_forward.3} parent=39 // pred_check
        %p495 = pneg %p112
      $region46: #{res_block_forward.3} parent=39 // pred_check_branch
        %497 = sbr.rel (%p495) target = $region48
      $region47: #{res_block_forward.3} parent=39 // pred_region
        %p498 = scmp.lt.s32.totalorder %s16, 1
        %s499 = scalar_select %p498, %s16, 1
        %s500 = smul.addr %s499, 2
        %s501 = scalar_lea.vmem %s3, %s500
      $region48: #{res_block_forward.3} parent=39 // pred_fallthru
        _
    $region40: #{res_block_forward.3} parent=5 // pred_fallthru
      _
  $region6: #{res_block_forward.3} parent=0 // loop_footer
    %s14 = sadd.s32 1, %s10
  $region7: #{res_block_forward.3} parent=0 // loop_footer_branch
    %9 = sbr.rel target = $region3
  $region8: #{res_block_forward.3} parent=0 // loop_exit
    _

// kernel: res_block_forward.4
$region0: #{res_block_forward.4}
  #allocation0 [shape = 'u32[]', space=smem, size = 0x4, offset = 0x4, fixed_abs, tag = 'smem constant byte address 0x4 - core index']
  #allocation1 [shape = 'u32[144,128]{1,0:T(1,128)}', space=vmem, size = 0x12000, scoped, tag = 'internal scratch']
  #allocation2 [shape = 'f32[18,128]{1,0:T(8,128)}', space=vmem, size = 0x3000, scoped, tag = 'scratch operand']
  %s0 = inlined_call_operand.vmem [shape: f32[2,16,128], index: 0, kind: input, shape index: {}]
  %s1 = inlined_call_operand.vmem [shape: bf16[3,128,128], index: 1, kind: input, shape index: {}]
  %s2 = inlined_call_operand.vmem [shape: f32[1,128], index: 2, kind: input, shape index: {}]
  %s3 = inlined_call_operand.vmem [shape: f32[1,128], index: 3, kind: input, shape index: {}]
  %s4 = inlined_call_operand.vmem [shape: f32[2,16,128], index: 4, kind: output, shape index: {0}]
  %s5 = inlined_call_operand.vmem [shape: f32[2,2,128], index: 5, kind: output, shape index: {1}]
  %6 = xla_tuple %s4, %s5
  %s7 = sld [smem:[#allocation0]]
  $region57: #{res_block_forward.4} parent=0
    _
  %s9 = ssub.s32 1, %s7
  %s10 = scalar_select 0, %s9, %s7
  loop: start=0, step=1, limit=4
  $region2: #{res_block_forward.4} parent=0 // loop_pre_header
    _
  $region3: #{res_block_forward.4} parent=0 // loop_header
    %s12 = sphi 0, %s16
    %p13 = scmp.ge.s32.totalorder %s12, 4
    %s22 = sphi 0, %s24
    %s25 = sphi 0, %s22
    %s26 = sphi 0, %s25
    %s42 = sphi 0, %s26
    %s46 = sphi 0, %s46
    %s48 = sphi 0, %s46
    %s49 = sphi 0, %s48
    %s63 = sphi 0, %s49
    %s67 = sphi 0, %s67
    %s69 = sphi 0, %s67
    %s70 = sphi 0, %s69
    %s84 = sphi 0, %s70
    %s88 = sphi 0, %s88
    %s90 = sphi 0, %s88
    %s91 = sphi 0, %s90
    %s105 = sphi 0, %s91
    %s111 = sphi 0, %s113
    %s114 = sphi 0, %s111
    %s115 = sphi 0, %s114
    %s131 = sphi 0, %s115
    %s137 = sphi 0, %s139
    %s140 = sphi 0, %s137
    %s141 = sphi 0, %s140
    %s157 = sphi 0, %s141
  $region4: #{res_block_forward.4} parent=0 // loop_header_branch
    %15 = sbr.rel (%p13) target = $region8
  $region5: #{res_block_forward.4} parent=0 // loop_body
    %s17 = ssub.s32 %s12, 1
    %s18 = ssub.s32 %s12, 2
    %s19 = sadd.s32 %s12, 1
    %s20 = ssub.s32 %s12, %s19
    %p21 = scmp.eq.s32.totalorder %s20, 0
    %s23 = sadd.s32 %s22, 1
    %s24 = scalar_select %p21, %s22, %s23
    %p27 = pneg %p21
    %p28 = scmp.eq.s32.totalorder %s12, 1
    %p29 = por %p27, %p28
    %p30 = scmp.ne.s32.totalorder %s22, %s25
    %p31 = scmp.eq.s32.totalorder %s12, 0
    %p32 = por %p30, %p31
    %p33 = scmp.ne.s32.totalorder %s22, %s25
    %p34 = scmp.eq.s32.totalorder %s17, 1
    %p35 = por %p33, %p34
    %p36 = scmp.ne.s32.totalorder %s25, %s26
    %p37 = scmp.eq.s32.totalorder %s17, 0
    %p38 = por %p36, %p37
    %p39 = scmp.ne.s32.totalorder %s25, %s26
    %p40 = scmp.eq.s32.totalorder %s18, 1
    %p41 = por %p39, %p40
    %p43 = scmp.ne.s32.totalorder %s26, %s42
    %p44 = scmp.eq.s32.totalorder %s18, 0
    %p45 = por %p43, %p44
    %s47 = sadd.s32 %s46, 1
    %p50 = scmp.eq.s32.totalorder %s12, 1
    %p51 = scmp.ne.s32.totalorder %s46, %s48
    %p52 = scmp.eq.s32.totalorder %s12, 0
    %p53 = por %p51, %p52
    %p54 = scmp.ne.s32.totalorder %s46, %s48
    %p55 = scmp.eq.s32.totalorder %s17, 1
    %p56 = por %p54, %p55
    %p57 = scmp.ne.s32.totalorder %s48, %s49
    %p58 = scmp.eq.s32.totalorder %s17, 0
    %p59 = por %p57, %p58
    %p60 = scmp.ne.s32.totalorder %s48, %s49
    %p61 = scmp.eq.s32.totalorder %s18, 1
    %p62 = por %p60, %p61
    %p64 = scmp.ne.s32.totalorder %s49, %s63
    %p65 = scmp.eq.s32.totalorder %s18, 0
    %p66 = por %p64, %p65
    %s68 = sadd.s32 %s67, 1
    %p71 = scmp.eq.s32.totalorder %s12, 1
    %p72 = scmp.ne.s32.totalorder %s67, %s69
    %p73 = scmp.eq.s32.totalorder %s12, 0
    %p74 = por %p72, %p73
    %p75 = scmp.ne.s32.totalorder %s67, %s69
    %p76 = scmp.eq.s32.totalorder %s17, 1
    %p77 = por %p75, %p76
    %p78 = scmp.ne.s32.totalorder %s69, %s70
    %p79 = scmp.eq.s32.totalorder %s17, 0
    %p80 = por %p78, %p79
    %p81 = scmp.ne.s32.totalorder %s69, %s70
    %p82 = scmp.eq.s32.totalorder %s18, 1
    %p83 = por %p81, %p82
    %p85 = scmp.ne.s32.totalorder %s70, %s84
    %p86 = scmp.eq.s32.totalorder %s18, 0
    %p87 = por %p85, %p86
    %s89 = sadd.s32 %s88, 1
    %p92 = scmp.eq.s32.totalorder %s12, 1
    %p93 = scmp.ne.s32.totalorder %s88, %s90
    %p94 = scmp.eq.s32.totalorder %s12, 0
    %p95 = por %p93, %p94
    %p96 = scmp.ne.s32.totalorder %s88, %s90
    %p97 = scmp.eq.s32.totalorder %s17, 1
    %p98 = por %p96, %p97
    %p99 = scmp.ne.s32.totalorder %s90, %s91
    %p100 = scmp.eq.s32.totalorder %s17, 0
    %p101 = por %p99, %p100
    %p102 = scmp.ne.s32.totalorder %s90, %s91
    %p103 = scmp.eq.s32.totalorder %s18, 1
    %p104 = por %p102, %p103
    %p106 = scmp.ne.s32.totalorder %s91, %s105
    %p107 = scmp.eq.s32.totalorder %s18, 0
    %p108 = por %p106, %p107
    %s109 = ssub.s32 %s12, %s19
    %p110 = scmp.eq.s32.totalorder %s109, 0
    %s112 = sadd.s32 %s111, 1
    %s113 = scalar_select %p110, %s111, %s112
    %p116 = pneg %p110
    %p117 = scmp.eq.s32.totalorder %s12, 1
    %p118 = por %p116, %p117
    %p119 = scmp.ne.s32.totalorder %s111, %s114
    %p120 = scmp.eq.s32.totalorder %s12, 0
    %p121 = por %p119, %p120
    %p122 = scmp.ne.s32.totalorder %s111, %s114
    %p123 = scmp.eq.s32.totalorder %s17, 1
    %p124 = por %p122, %p123
    %p125 = scmp.ne.s32.totalorder %s114, %s115
    %p126 = scmp.eq.s32.totalorder %s17, 0
    %p127 = por %p125, %p126
    %p128 = scmp.ne.s32.totalorder %s114, %s115
    %p129 = scmp.eq.s32.totalorder %s18, 1
    %p130 = por %p128, %p129
    %p132 = scmp.ne.s32.totalorder %s115, %s131
    %p133 = scmp.eq.s32.totalorder %s18, 0
    %p134 = por %p132, %p133
    %s135 = ssub.s32 %s12, %s19
    %p136 = scmp.eq.s32.totalorder %s135, 0
    %s138 = sadd.s32 %s137, 1
    %s139 = scalar_select %p136, %s137, %s138
    %p142 = pneg %p136
    %p143 = scmp.eq.s32.totalorder %s12, 1
    %p144 = por %p142, %p143
    %p145 = scmp.ne.s32.totalorder %s137, %s140
    %p146 = scmp.eq.s32.totalorder %s12, 0
    %p147 = por %p145, %p146
    %p148 = scmp.ne.s32.totalorder %s137, %s140
    %p149 = scmp.eq.s32.totalorder %s17, 1
    %p150 = por %p148, %p149
    %p151 = scmp.ne.s32.totalorder %s140, %s141
    %p152 = scmp.eq.s32.totalorder %s17, 0
    %p153 = por %p151, %p152
    %p154 = scmp.ne.s32.totalorder %s140, %s141
    %p155 = scmp.eq.s32.totalorder %s18, 1
    %p156 = por %p154, %p155
    %p158 = scmp.ne.s32.totalorder %s141, %s157
    %p159 = scmp.eq.s32.totalorder %s18, 0
    %p160 = por %p158, %p159
    %p161 = scmp.le.s32.totalorder 1, %s12
    %p162 = scmp.lt.s32.totalorder %s12, 3
    %p163 = pnand %p161, %p162
    %p164 = pneg %p163
    // Predicated region
    $region9: #{res_block_forward.4} parent=5 // pred_check
      _
    $region10: #{res_block_forward.4} parent=5 // pred_check_branch
      %166 = sbr.rel (%p163) target = $region12
    $region11: #{res_block_forward.4} parent=5 // pred_region
      %s167 = ssub.s32 %s12, 1
      // Predicated region
      $region13: #{res_block_forward.4} parent=11 // pred_check
        %p168 = pneg %p59
      $region14: #{res_block_forward.4} parent=11 // pred_check_branch
        %170 = sbr.rel (%p168) target = $region16
      $region15: #{res_block_forward.4} parent=11 // pred_region
        _
      $region16: #{res_block_forward.4} parent=11 // pred_fallthru
        _
      // Predicated region
      $region17: #{res_block_forward.4} parent=11 // pred_check
        %p171 = pneg %p80
      $region18: #{res_block_forward.4} parent=11 // pred_check_branch
        %173 = sbr.rel (%p171) target = $region20
      $region19: #{res_block_forward.4} parent=11 // pred_region
        _
      $region20: #{res_block_forward.4} parent=11 // pred_fallthru
        _
      // Predicated region
      $region21: #{res_block_forward.4} parent=11 // pred_check
        %p174 = pneg %p101
      $region22: #{res_block_forward.4} parent=11 // pred_check_branch
        %176 = sbr.rel (%p174) target = $region24
      $region23: #{res_block_forward.4} parent=11 // pred_region
        _
      $region24: #{res_block_forward.4} parent=11 // pred_fallthru
        _
    $region12: #{res_block_forward.4} parent=5 // pred_fallthru
      _
    %p177 = scmp.lt.s32.totalorder %s12, 2
    // Predicated region
    $region25: #{res_block_forward.4} parent=5 // pred_check
      %p178 = pneg %p177
    $region26: #{res_block_forward.4} parent=5 // pred_check_branch
      %180 = sbr.rel (%p178) target = $region28
    $region27: #{res_block_forward.4} parent=5 // pred_region
      // Predicated region
      $region29: #{res_block_forward.4} parent=27 // pred_check
        %p181 = pneg %p32
      $region30: #{res_block_forward.4} parent=27 // pred_check_branch
        %183 = sbr.rel (%p181) target = $region32
      $region31: #{res_block_forward.4} parent=27 // pred_region
        %p184 = scmp.lt.s32.totalorder %s12, 1
        %s185 = scalar_select %p184, %s12, 1
        %s186 = smul.addr %s185, 2
        %s187 = smul.addr %s186, 8
        %s188 = scalar_lea.vmem %s0, %s187
      $region32: #{res_block_forward.4} parent=27 // pred_fallthru
        _
    $region28: #{res_block_forward.4} parent=5 // pred_fallthru
      _
    %p189 = scmp.le.s32.totalorder 1, %s12
    %p190 = scmp.lt.s32.totalorder %s12, 3
    %p191 = pnand %p189, %p190
    %p192 = pneg %p191
    // Predicated region
    $region33: #{res_block_forward.4} parent=5 // pred_check
      _
    $region34: #{res_block_forward.4} parent=5 // pred_check_branch
      %194 = sbr.rel (%p191) target = $region36
    $region35: #{res_block_forward.4} parent=5 // pred_region
      %s195 = ssub.s32 %s12, 1
      %p196 = scmp.lt.s32.totalorder %s17, 1
      %s197 = scalar_select %p196, %s17, 1
      %s198 = smul.addr %s197, 2
      %s199 = smul.addr %s198, 8
      %s200 = scalar_lea.vmem %s0, %s199
      %p201 = pneg %p38
      %p202 = pneg %p35
      %p203 = pneg %p59
      %p204 = pneg %p56
      %p205 = pneg %p80
      %p206 = pneg %p77
      %p207 = pneg %p101
      %p208 = pneg %p98
      %p209 = pneg %p127
      %p210 = pneg %p124
      %p211 = scmp.lt.s32.totalorder %s17, 1
      %s212 = scalar_select %p211, %s17, 1
      %s213 = smul.addr %s212, 2
      %s214 = smul.addr %s213, 8
      %s215 = scalar_lea.vmem %s4, %s214
      %p216 = pneg %p153
      %p217 = pneg %p150
      %p218 = scmp.lt.s32.totalorder %s17, 1
      %s219 = scalar_select %p218, %s17, 1
      %s220 = smul.addr %s219, 2
      %s221 = scalar_lea.vmem %s5, %s220
      %p222 = scmp.lt.s32.totalorder %s17, 1
      %s223 = scalar_select %p222, %s17, 1
      %s224 = smul.addr %s223, 2
      %s225 = smul.addr %s224, 8
      %s226 = scalar_lea.vmem %s0, %s225
      %p227 = scmp.lt.s32.totalorder %s17, 1
      %s228 = scalar_select %p227, %s17, 1
      %s229 = smul.addr %s228, 2
      %s230 = smul.addr %s229, 8
      %s231 = scalar_lea.vmem %s4, %s230
      %p232 = scmp.lt.s32.totalorder %s17, 1
      %s233 = scalar_select %p232, %s17, 1
      %s234 = smul.addr %s233, 2
      %s235 = scalar_lea.vmem %s5, %s234
      %v237 = vld [vmem:[%s226] sm:$0xff]
      %v238 = vld [vmem:[%s226 + $0x8] sm:$0xff]
      %v239 = vld [vmem:[%s2] sm:$0x1]
      %v241 = vlaneseq
      %v242 = vshrl.u32 %v241, 7
      %v243 = vsub.s32 0, %v242
      %v244 = vrot.slane %v239, %v243
      %v246 = vmul.f32 %v237, %v244
      %v247 = vmul.f32 %v238, %v244
      %v248 = vld [vmem:[%s3] sm:$0x1]
      %v250 = vlaneseq
      %v251 = vshrl.u32 %v250, 7
      %v252 = vsub.s32 0, %v251
      %v253 = vrot.slane %v248, %v252
      %v255 = vadd.f32 %v246, %v253
      %v256 = vadd.f32 %v247, %v253
      %v257 = vmax.f32 %v255, 0.0
      %v258 = vmax.f32 %v256, 0.0
      %259 = vst [vmem:[#allocation2] sm:$0x1] 0.0
      %260 = vst [vmem:[#allocation2 + $0x11] sm:$0x1] 0.0
      %261 = vst [vmem:[#allocation2 + $0x1] sm:$0xff] %v257
      %262 = vst [vmem:[#allocation2 + $0x9] sm:$0xff] %v258
      %v263 = vld [vmem:[#allocation2] sm:$0xff]
      %v264 = vld [vmem:[#allocation2 + $0x8] sm:$0xff]
      %v265 = vpack.c.bf16 %v264, %v263
      %v266 = vld [vmem:[%s1] sm:$0xf]
      %v267 = vld [vmem:[%s1 + $0x4] sm:$0xf]
      %v268 = vld [vmem:[%s1 + $0x8] sm:$0xf]
      %v269 = vld [vmem:[%s1 + $0xc] sm:$0xf]
      %v270 = vld [vmem:[%s1 + $0x10] sm:$0xf]
      %v271 = vld [vmem:[%s1 + $0x14] sm:$0xf]
      %v272 = vld [vmem:[%s1 + $0x18] sm:$0xf]
      %v273 = vld [vmem:[%s1 + $0x1c] sm:$0xf]
      %v274 = vld [vmem:[%s1 + $0x20] sm:$0xf]
      %v275 = vld [vmem:[%s1 + $0x24] sm:$0xf]
      %v276 = vld [vmem:[%s1 + $0x28] sm:$0xf]
      %v277 = vld [vmem:[%s1 + $0x2c] sm:$0xf]
      %v278 = vld [vmem:[%s1 + $0x30] sm:$0xf]
      %v279 = vld [vmem:[%s1 + $0x34] sm:$0xf]
      %v280 = vld [vmem:[%s1 + $0x38] sm:$0xf]
      %v281 = vld [vmem:[%s1 + $0x3c] sm:$0xf]
      %v282 = vld [vmem:[#allocation2 + $0x1] sm:$0xff]
      %v283 = vld [vmem:[#allocation2 + $0x9] sm:$0xff]
      %v284 = vpack.c.bf16 %v283, %v282
      %s285 = scalar_lea.vmem %s1, 64
      %v286 = vld [vmem:[%s285] sm:$0xf]
      %v287 = vld [vmem:[%s285 + $0x4] sm:$0xf]
      %v288 = vld [vmem:[%s285 + $0x8] sm:$0xf]
      %v289 = vld [vmem:[%s285 + $0xc] sm:$0xf]
      %v290 = vld [vmem:[%s285 + $0x10] sm:$0xf]
      %v291 = vld [vmem:[%s285 + $0x14] sm:$0xf]
      %v292 = vld [vmem:[%s285 + $0x18] sm:$0xf]
      %v293 = vld [vmem:[%s285 + $0x1c] sm:$0xf]
      %v294 = vld [vmem:[%s285 + $0x20] sm:$0xf]
      %v295 = vld [vmem:[%s285 + $0x24] sm:$0xf]
      %v296 = vld [vmem:[%s285 + $0x28] sm:$0xf]
      %v297 = vld [vmem:[%s285 + $0x2c] sm:$0xf]
      %v298 = vld [vmem:[%s285 + $0x30] sm:$0xf]
      %v299 = vld [vmem:[%s285 + $0x34] sm:$0xf]
      %v300 = vld [vmem:[%s285 + $0x38] sm:$0xf]
      %v301 = vld [vmem:[%s285 + $0x3c] sm:$0xf]
      %v318 = vunpack.c.l.b16 %v286
      %v319 = vunpack.c.l.b16 %v287
      %v320 = vunpack.c.l.b16 %v288
      %v321 = vunpack.c.l.b16 %v289
      %v322 = vunpack.c.l.b16 %v290
      %v323 = vunpack.c.l.b16 %v291
      %v324 = vunpack.c.l.b16 %v292
      %v325 = vunpack.c.l.b16 %v293
      %v326 = vunpack.c.l.b16 %v294
      %v327 = vunpack.c.l.b16 %v295
      %v328 = vunpack.c.l.b16 %v296
      %v329 = vunpack.c.l.b16 %v297
      %v330 = vunpack.c.l.b16 %v298
      %v331 = vunpack.c.l.b16 %v299
      %v332 = vunpack.c.l.b16 %v300
      %v333 = vunpack.c.l.b16 %v301
      %v334 = vpack.c.b16 %v319, %v318
      %v335 = vpack.c.b16 %v321, %v320
      %v336 = vpack.c.b16 %v323, %v322
      %v337 = vpack.c.b16 %v325, %v324
      %v338 = vpack.c.b16 %v327, %v326
      %v339 = vpack.c.b16 %v329, %v328
      %v340 = vpack.c.b16 %v331, %v330
      %v341 = vpack.c.b16 %v333, %v332
      %350 = vmatprep.subr.bf16.mxu0 0
      %351 = vmatpush1.bf16.msra.mxu0 %v334
      %352 = vmatprep.subr.bf16.mxu0 0
      %353 = vmatpush1.bf16.msra.mxu0 %v335
      %354 = vmatprep.subr.bf16.mxu0 0
      %355 = vmatpush1.bf16.msra.mxu0 %v336
      %356 = vmatprep.subr.bf16.mxu0 0
      %357 = vmatpush1.bf16.msra.mxu0 %v337
      %358 = vmatprep.subr.bf16.mxu0 0
      %359 = vmatpush1.bf16.msra.mxu0 %v338
      %360 = vmatprep.subr.bf16.mxu0 0
      %361 = vmatpush1.bf16.msra.mxu0 %v339
      %362 = vmatprep.subr.bf16.mxu0 0
      %363 = vmatpush1.bf16.msra.mxu0 %v340
      %364 = vmatprep.subr.bf16.mxu0 0
      %365 = vmatpush1.bf16.msra.mxu0 %v341
      %366 = vmatprep.subr.bf16.mxu0 0
      %367 = vmatpush1.bf16.msra.mxu0 0
      %368 = vmatprep.subr.bf16.mxu0 0
      %369 = vmatpush1.bf16.msra.mxu0 0
      %370 = vmatprep.subr.bf16.mxu0 0
      %371 = vmatpush1.bf16.msra.mxu0 0
      %372 = vmatprep.subr.bf16.mxu0 0
      %373 = vmatpush1.bf16.msra.mxu0 0
      %374 = vmatprep.subr.bf16.mxu0 0
      %375 = vmatpush1.bf16.msra.mxu0 0
      %376 = vmatprep.subr.bf16.mxu0 0
      %377 = vmatpush1.bf16.msra.mxu0 0
      %378 = vmatprep.subr.bf16.mxu0 0
      %379 = vmatpush1.bf16.msra.mxu0 0
      %380 = vmatprep.subr.bf16.mxu0 0
      %381 = vmatpush1.bf16.msra.mxu0 0
      %382 = vmatprep.mubr.bf16.mxu0 0
      %383 = vmatmul.mubr.bf16.gmra.mrb[0].mxu0 %v284
      %v384 = vpop.f32.mrb[0].mxu0
      %v385 = vadd.f32 0.0, %v384
      %v386 = vpop.f32.mrb[0].mxu0
      %v387 = vpop.f32.mrb[0].mxu0
      %v388 = vadd.f32 0.0, %v387
      %v389 = vpop.f32.mrb[0].mxu0
      %390 = vdwg.mxu0
      %v407 = vunpack.c.l.b16 %v266
      %v408 = vunpack.c.l.b16 %v267
      %v409 = vunpack.c.l.b16 %v268
      %v410 = vunpack.c.l.b16 %v269
      %v411 = vunpack.c.l.b16 %v270
      %v412 = vunpack.c.l.b16 %v271
      %v413 = vunpack.c.l.b16 %v272
      %v414 = vunpack.c.l.b16 %v273
      %v415 = vunpack.c.l.b16 %v274
      %v416 = vunpack.c.l.b16 %v275
      %v417 = vunpack.c.l.b16 %v276
      %v418 = vunpack.c.l.b16 %v277
      %v419 = vunpack.c.l.b16 %v278
      %v420 = vunpack.c.l.b16 %v279
      %v421 = vunpack.c.l.b16 %v280
      %v422 = vunpack.c.l.b16 %v281
      %v423 = vpack.c.b16 %v408, %v407
      %v424 = vpack.c.b16 %v410, %v409
      %v425 = vpack.c.b16 %v412, %v411
      %v426 = vpack.c.b16 %v414, %v413
      %v427 = vpack.c.b16 %v416, %v415
      %v428 = vpack.c.b16 %v418, %v417
      %v429 = vpack.c.b16 %v420, %v419
      %v430 = vpack.c.b16 %v422, %v421
      %439 = vmatprep.subr.bf16.mxu0 0
      %440 = vmatpush1.bf16.msra.mxu0 %v423
      %441 = vmatprep.subr.bf16.mxu0 0
      %442 = vmatpush1.bf16.msra.mxu0 %v424
      %443 = vmatprep.subr.bf16.mxu0 0
      %444 = vmatpush1.bf16.msra.mxu0 %v425
      %445 = vmatprep.subr.bf16.mxu0 0
      %446 = vmatpush1.bf16.msra.mxu0 %v426
      %447 = vmatprep.subr.bf16.mxu0 0
      %448 = vmatpush1.bf16.msra.mxu0 %v427
      %449 = vmatprep.subr.bf16.mxu0 0
      %450 = vmatpush1.bf16.msra.mxu0 %v428
      %451 = vmatprep.subr.bf16.mxu0 0
      %452 = vmatpush1.bf16.msra.mxu0 %v429
      %453 = vmatprep.subr.bf16.mxu0 0
      %454 = vmatpush1.bf16.msra.mxu0 %v430
      %455 = vmatprep.subr.bf16.mxu0 0
      %456 = vmatpush1.bf16.msra.mxu0 0
      %457 = vmatprep.subr.bf16.mxu0 0
      %458 = vmatpush1.bf16.msra.mxu0 0
      %459 = vmatprep.subr.bf16.mxu0 0
      %460 = vmatpush1.bf16.msra.mxu0 0
      %461 = vmatprep.subr.bf16.mxu0 0
      %462 = vmatpush1.bf16.msra.mxu0 0
      %463 = vmatprep.subr.bf16.mxu0 0
      %464 = vmatpush1.bf16.msra.mxu0 0
      %465 = vmatprep.subr.bf16.mxu0 0
      %466 = vmatpush1.bf16.msra.mxu0 0
      %467 = vmatprep.subr.bf16.mxu0 0
      %468 = vmatpush1.bf16.msra.mxu0 0
      %469 = vmatprep.subr.bf16.mxu0 0
      %470 = vmatpush1.bf16.msra.mxu0 0
      %471 = vmatprep.mubr.bf16.mxu0 0
      %472 = vmatmul.mubr.bf16.gmra.mrb[0].mxu0 %v265
      %v473 = vpop.f32.mrb[0].mxu0
      %v474 = vadd.f32 %v385, %v473
      %v475 = vpop.f32.mrb[0].mxu0
      %v476 = vpop.f32.mrb[0].mxu0
      %v477 = vadd.f32 %v388, %v476
      %v478 = vpop.f32.mrb[0].mxu0
      %479 = vdwg.mxu0
      %v480 = vld [vmem:[#allocation2 + $0x2] sm:$0xff]
      %v481 = vld [vmem:[#allocation2 + $0xa] sm:$0xff]
      %v482 = vpack.c.bf16 %v481, %v480
      %s483 = scalar_lea.vmem %s1, 128
      %v484 = vld [vmem:[%s483] sm:$0xf]
      %v485 = vld [vmem:[%s483 + $0x4] sm:$0xf]
      %v486 = vld [vmem:[%s483 + $0x8] sm:$0xf]
      %v487 = vld [vmem:[%s483 + $0xc] sm:$0xf]
      %v488 = vld [vmem:[%s483 + $0x10] sm:$0xf]
      %v489 = vld [vmem:[%s483 + $0x14] sm:$0xf]
      %v490 = vld [vmem:[%s483 + $0x18] sm:$0xf]
      %v491 = vld [vmem:[%s483 + $0x1c] sm:$0xf]
      %v492 = vld [vmem:[%s483 + $0x20] sm:$0xf]
      %v493 = vld [vmem:[%s483 + $0x24] sm:$0xf]
      %v494 = vld [vmem:[%s483 + $0x28] sm:$0xf]
      %v495 = vld [vmem:[%s483 + $0x2c] sm:$0xf]
      %v496 = vld [vmem:[%s483 + $0x30] sm:$0xf]
      %v497 = vld [vmem:[%s483 + $0x34] sm:$0xf]
      %v498 = vld [vmem:[%s483 + $0x38] sm:$0xf]
      %v499 = vld [vmem:[%s483 + $0x3c] sm:$0xf]
      %v516 = vunpack.c.l.b16 %v484
      %v517 = vunpack.c.l.b16 %v485
      %v518 = vunpack.c.l.b16 %v486
      %v519 = vunpack.c.l.b16 %v487
      %v520 = vunpack.c.l.b16 %v488
      %v521 = vunpack.c.l.b16 %v489
      %v522 = vunpack.c.l.b16 %v490
      %v523 = vunpack.c.l.b16 %v491
      %v524 = vunpack.c.l.b16 %v492
      %v525 = vunpack.c.l.b16 %v493
      %v526 = vunpack.c.l.b16 %v494
      %v527 = vunpack.c.l.b16 %v495
      %v528 = vunpack.c.l.b16 %v496
      %v529 = vunpack.c.l.b16 %v497
      %v530 = vunpack.c.l.b16 %v498
      %v531 = vunpack.c.l.b16 %v499
      %v532 = vpack.c.b16 %v517, %v516
      %v533 = vpack.c.b16 %v519, %v518
      %v534 = vpack.c.b16 %v521, %v520
      %v535 = vpack.c.b16 %v523, %v522
      %v536 = vpack.c.b16 %v525, %v524
      %v537 = vpack.c.b16 %v527, %v526
      %v538 = vpack.c.b16 %v529, %v528
      %v539 = vpack.c.b16 %v531, %v530
      %548 = vmatprep.subr.bf16.mxu0 0
      %549 = vmatpush1.bf16.msra.mxu0 %v532
      %550 = vmatprep.subr.bf16.mxu0 0
      %551 = vmatpush1.bf16.msra.mxu0 %v533
      %552 = vmatprep.subr.bf16.mxu0 0
      %553 = vmatpush1.bf16.msra.mxu0 %v534
      %554 = vmatprep.subr.bf16.mxu0 0
      %555 = vmatpush1.bf16.msra.mxu0 %v535
      %556 = vmatprep.subr.bf16.mxu0 0
      %557 = vmatpush1.bf16.msra.mxu0 %v536
      %558 = vmatprep.subr.bf16.mxu0 0
      %559 = vmatpush1.bf16.msra.mxu0 %v537
      %560 = vmatprep.subr.bf16.mxu0 0
      %561 = vmatpush1.bf16.msra.mxu0 %v538
      %562 = vmatprep.subr.bf16.mxu0 0
      %563 = vmatpush1.bf16.msra.mxu0 %v539
      %564 = vmatprep.subr.bf16.mxu0 0
      %565 = vmatpush1.bf16.msra.mxu0 0
      %566 = vmatprep.subr.bf16.mxu0 0
      %567 = vmatpush1.bf16.msra.mxu0 0
      %568 = vmatprep.subr.bf16.mxu0 0
      %569 = vmatpush1.bf16.msra.mxu0 0
      %570 = vmatprep.subr.bf16.mxu0 0
      %571 = vmatpush1.bf16.msra.mxu0 0
      %572 = vmatprep.subr.bf16.mxu0 0
      %573 = vmatpush1.bf16.msra.mxu0 0
      %574 = vmatprep.subr.bf16.mxu0 0
      %575 = vmatpush1.bf16.msra.mxu0 0
      %576 = vmatprep.subr.bf16.mxu0 0
      %577 = vmatpush1.bf16.msra.mxu0 0
      %578 = vmatprep.subr.bf16.mxu0 0
      %579 = vmatpush1.bf16.msra.mxu0 0
      %580 = vmatprep.mubr.bf16.mxu0 0
      %581 = vmatmul.mubr.bf16.gmra.mrb[0].mxu0 %v482
      %v582 = vpop.f32.mrb[0].mxu0
      %v583 = vadd.f32 0.0, %v582
      %v584 = vpop.f32.mrb[0].mxu0
      %v585 = vpop.f32.mrb[0].mxu0
      %v586 = vadd.f32 0.0, %v585
      %v587 = vpop.f32.mrb[0].mxu0
      %588 = vdwg.mxu0
      %v589 = vadd.f32 %v474, %v583
      %v590 = vadd.f32 %v477, %v586
      %591 = vst [vmem:[%s231] sm:$0xff] %v589
      %592 = vst [vmem:[%s231 + $0x8] sm:$0xff] %v590
      %v593 = vadd.f32 %v589, %v590
      %v594 = vrot.slane %v593, 4
      %v595 = vadd.f32 %v593, %v594
      %v596 = vrot.slane %v595, 2
      %v597 = vadd.f32 %v595, %v596
      %v598 = vrot.slane %v597, 1
      %v599 = vadd.f32 %v597, %v598
      %600 = vst [vmem:[%s235] sm:$0x1] %v599
      %v601 = vmul.f32 %v589, %v589
      %v602 = vmul.f32 %v590, %v590
      %v603 = vadd.f32 %v601, %v602
      %v604 = vrot.slane %v603, 4
      %v605 = vadd.f32 %v603, %v604
      %v606 = vrot.slane %v605, 2
      %v607 = vadd.f32 %v605, %v606
      %v608 = vrot.slane %v607, 1
      %v609 = vadd.f32 %v607, %v608
      %610 = vst [vmem:[%s235 + $0x1] sm:$0x1] %v609
      %p611 = scmp.lt.s32.totalorder %s17, 1
      %s612 = scalar_select %p611, %s17, 1
      %s613 = smul.addr %s612, 2
      %s614 = smul.addr %s613, 8
      %s615 = scalar_lea.vmem %s4, %s614
      %p616 = scmp.lt.s32.totalorder %s17, 1
      %s617 = scalar_select %p616, %s17, 1
      %s618 = smul.addr %s617, 2
      %s619 = scalar_lea.vmem %s5, %s618
      // Predicated region
      $region37: #{res_block_forward.4} parent=35 // pred_check
        %p620 = pneg %p124
      $region38: #{res_block_forward.4} parent=35 // pred_check_branch
        %622 = sbr.rel (%p620) target = $region40
      $region39: #{res_block_forward.4} parent=35 // pred_region
        _
      $region40: #{res_block_forward.4} parent=35 // pred_fallthru
        _
      // Predicated region
      $region41: #{res_block_forward.4} parent=35 // pred_check
        %p623 = pneg %p150
      $region42: #{res_block_forward.4} parent=35 // pred_check_branch
        %625 = sbr.rel (%p623) target = $region44
      $region43: #{res_block_forward.4} parent=35 // pred_region
        _
      $region44: #{res_block_forward.4} parent=35 // pred_fallthru
        _
    $region36: #{res_block_forward.4} parent=5 // pred_fallthru
      _
    %p626 = scmp.le.s32.totalorder 2, %s12
    // Predicated region
    $region45: #{res_block_forward.4} parent=5 // pred_check
      %p627 = pneg %p626
    $region46: #{res_block_forward.4} parent=5 // pred_check_branch
      %629 = sbr.rel (%p627) target = $region48
    $region47: #{res_block_forward.4} parent=5 // pred_region
      %s630 = ssub.s32 %s12, 2
      // Predicated region
      $region49: #{res_block_forward.4} parent=47 // pred_check
        %p631 = pneg %p130
      $region50: #{res_block_forward.4} parent=47 // pred_check_branch
        %633 = sbr.rel (%p631) target = $region52
      $region51: #{res_block_forward.4} parent=47 // pred_region
        %p634 = scmp.lt.s32.totalorder %s18, 1
        %s635 = scalar_select %p634, %s18, 1
        %s636 = smul.addr %s635, 2
        %s637 = smul.addr %s636, 8
        %s638 = scalar_lea.vmem %s4, %s637
      $region52: #{res_block_forward.4} parent=47 // pred_fallthru
        _
      // Predicated region
      $region53: #{res_block_forward.4} parent=47 // pred_check
        %p639 = pneg %p156
      $region54: #{res_block_forward.4} parent=47 // pred_check_branch
        %641 = sbr.rel (%p639) target = $region56
      $region55: #{res_block_forward.4} parent=47 // pred_region
        %p642 = scmp.lt.s32.totalorder %s18, 1
        %s643 = scalar_select %p642, %s18, 1
        %s644 = smul.addr %s643, 2
        %s645 = scalar_lea.vmem %s5, %s644
      $region56: #{res_block_forward.4} parent=47 // pred_fallthru
        _
    $region48: #{res_block_forward.4} parent=5 // pred_fallthru
      _
  $region6: #{res_block_forward.4} parent=0 // loop_footer
    %s16 = sadd.s32 1, %s12
  $region7: #{res_block_forward.4} parent=0 // loop_footer_branch
    %11 = sbr.rel target = $region3
  $region8: #{res_block_forward.4} parent=0 // loop_exit
    _

// kernel: res_block_forward.5
$region0: #{res_block_forward.5}
  #allocation0 [shape = 'u32[]', space=smem, size = 0x4, offset = 0x4, fixed_abs, tag = 'smem constant byte address 0x4 - core index']
  #allocation1 [shape = 'u32[144,128]{1,0:T(1,128)}', space=vmem, size = 0x12000, scoped, tag = 'internal scratch']
  %s0 = inlined_call_operand.vmem [shape: f32[2,16,128], index: 0, kind: input, shape index: {}]
  %s1 = inlined_call_operand.vmem [shape: f32[2,16,128], index: 1, kind: input, shape index: {}]
  %s2 = inlined_call_operand.vmem [shape: f32[1,128], index: 2, kind: input, shape index: {}]
  %s3 = inlined_call_operand.vmem [shape: f32[1,128], index: 3, kind: input, shape index: {}]
  %s4 = inlined_call_operand.vmem [shape: f32[1,128], index: 4, kind: input, shape index: {}]
  %s5 = inlined_call_operand.vmem [shape: f32[1,128], index: 5, kind: input, shape index: {}]
  %s6 = inlined_call_operand.vmem [shape: f32[2,16,128], index: 6, kind: output, shape index: {}]
  %s7 = sld [smem:[#allocation0]]
  $region57: #{res_block_forward.5} parent=0
    _
  %s9 = ssub.s32 1, %s7
  %s10 = scalar_select 0, %s9, %s7
  loop: start=0, step=1, limit=4
  $region2: #{res_block_forward.5} parent=0 // loop_pre_header
    _
  $region3: #{res_block_forward.5} parent=0 // loop_header
    %s12 = sphi 0, %s16
    %p13 = scmp.ge.s32.totalorder %s12, 4
    %s22 = sphi 0, %s24
    %s25 = sphi 0, %s22
    %s26 = sphi 0, %s25
    %s42 = sphi 0, %s26
    %s48 = sphi 0, %s50
    %s51 = sphi 0, %s48
    %s52 = sphi 0, %s51
    %s68 = sphi 0, %s52
    %s72 = sphi 0, %s72
    %s74 = sphi 0, %s72
    %s75 = sphi 0, %s74
    %s89 = sphi 0, %s75
    %s93 = sphi 0, %s93
    %s95 = sphi 0, %s93
    %s96 = sphi 0, %s95
    %s110 = sphi 0, %s96
    %s114 = sphi 0, %s114
    %s116 = sphi 0, %s114
    %s117 = sphi 0, %s116
    %s131 = sphi 0, %s117
    %s135 = sphi 0, %s135
    %s137 = sphi 0, %s135
    %s138 = sphi 0, %s137
    %s152 = sphi 0, %s138
    %s158 = sphi 0, %s160
    %s161 = sphi 0, %s158
    %s162 = sphi 0, %s161
    %s178 = sphi 0, %s162
  $region4: #{res_block_forward.5} parent=0 // loop_header_branch
    %15 = sbr.rel (%p13) target = $region8
  $region5: #{res_block_forward.5} parent=0 // loop_body
    %s17 = ssub.s32 %s12, 1
    %s18 = ssub.s32 %s12, 2
    %s19 = sadd.s32 %s12, 1
    %s20 = ssub.s32 %s12, %s19
    %p21 = scmp.eq.s32.totalorder %s20, 0
    %s23 = sadd.s32 %s22, 1
    %s24 = scalar_select %p21, %s22, %s23
    %p27 = pneg %p21
    %p28 = scmp.eq.s32.totalorder %s12, 1
    %p29 = por %p27, %p28
    %p30 = scmp.ne.s32.totalorder %s22, %s25
    %p31 = scmp.eq.s32.totalorder %s12, 0
    %p32 = por %p30, %p31
    %p33 = scmp.ne.s32.totalorder %s22, %s25
    %p34 = scmp.eq.s32.totalorder %s17, 1
    %p35 = por %p33, %p34
    %p36 = scmp.ne.s32.totalorder %s25, %s26
    %p37 = scmp.eq.s32.totalorder %s17, 0
    %p38 = por %p36, %p37
    %p39 = scmp.ne.s32.totalorder %s25, %s26
    %p40 = scmp.eq.s32.totalorder %s18, 1
    %p41 = por %p39, %p40
    %p43 = scmp.ne.s32.totalorder %s26, %s42
    %p44 = scmp.eq.s32.totalorder %s18, 0
    %p45 = por %p43, %p44
    %s46 = ssub.s32 %s12, %s19
    %p47 = scmp.eq.s32.totalorder %s46, 0
    %s49 = sadd.s32 %s48, 1
    %s50 = scalar_select %p47, %s48, %s49
    %p53 = pneg %p47
    %p54 = scmp.eq.s32.totalorder %s12, 1
    %p55 = por %p53, %p54
    %p56 = scmp.ne.s32.totalorder %s48, %s51
    %p57 = scmp.eq.s32.totalorder %s12, 0
    %p58 = por %p56, %p57
    %p59 = scmp.ne.s32.totalorder %s48, %s51
    %p60 = scmp.eq.s32.totalorder %s17, 1
    %p61 = por %p59, %p60
    %p62 = scmp.ne.s32.totalorder %s51, %s52
    %p63 = scmp.eq.s32.totalorder %s17, 0
    %p64 = por %p62, %p63
    %p65 = scmp.ne.s32.totalorder %s51, %s52
    %p66 = scmp.eq.s32.totalorder %s18, 1
    %p67 = por %p65, %p66
    %p69 = scmp.ne.s32.totalorder %s52, %s68
    %p70 = scmp.eq.s32.totalorder %s18, 0
    %p71 = por %p69, %p70
    %s73 = sadd.s32 %s72, 1
    %p76 = scmp.eq.s32.totalorder %s12, 1
    %p77 = scmp.ne.s32.totalorder %s72, %s74
    %p78 = scmp.eq.s32.totalorder %s12, 0
    %p79 = por %p77, %p78
    %p80 = scmp.ne.s32.totalorder %s72, %s74
    %p81 = scmp.eq.s32.totalorder %s17, 1
    %p82 = por %p80, %p81
    %p83 = scmp.ne.s32.totalorder %s74, %s75
    %p84 = scmp.eq.s32.totalorder %s17, 0
    %p85 = por %p83, %p84
    %p86 = scmp.ne.s32.totalorder %s74, %s75
    %p87 = scmp.eq.s32.totalorder %s18, 1
    %p88 = por %p86, %p87
    %p90 = scmp.ne.s32.totalorder %s75, %s89
    %p91 = scmp.eq.s32.totalorder %s18, 0
    %p92 = por %p90, %p91
    %s94 = sadd.s32 %s93, 1
    %p97 = scmp.eq.s32.totalorder %s12, 1
    %p98 = scmp.ne.s32.totalorder %s93, %s95
    %p99 = scmp.eq.s32.totalorder %s12, 0
    %p100 = por %p98, %p99
    %p101 = scmp.ne.s32.totalorder %s93, %s95
    %p102 = scmp.eq.s32.totalorder %s17, 1
    %p103 = por %p101, %p102
    %p104 = scmp.ne.s32.totalorder %s95, %s96
    %p105 = scmp.eq.s32.totalorder %s17, 0
    %p106 = por %p104, %p105
    %p107 = scmp.ne.s32.totalorder %s95, %s96
    %p108 = scmp.eq.s32.totalorder %s18, 1
    %p109 = por %p107, %p108
    %p111 = scmp.ne.s32.totalorder %s96, %s110
    %p112 = scmp.eq.s32.totalorder %s18, 0
    %p113 = por %p111, %p112
    %s115 = sadd.s32 %s114, 1
    %p118 = scmp.eq.s32.totalorder %s12, 1
    %p119 = scmp.ne.s32.totalorder %s114, %s116
    %p120 = scmp.eq.s32.totalorder %s12, 0
    %p121 = por %p119, %p120
    %p122 = scmp.ne.s32.totalorder %s114, %s116
    %p123 = scmp.eq.s32.totalorder %s17, 1
    %p124 = por %p122, %p123
    %p125 = scmp.ne.s32.totalorder %s116, %s117
    %p126 = scmp.eq.s32.totalorder %s17, 0
    %p127 = por %p125, %p126
    %p128 = scmp.ne.s32.totalorder %s116, %s117
    %p129 = scmp.eq.s32.totalorder %s18, 1
    %p130 = por %p128, %p129
    %p132 = scmp.ne.s32.totalorder %s117, %s131
    %p133 = scmp.eq.s32.totalorder %s18, 0
    %p134 = por %p132, %p133
    %s136 = sadd.s32 %s135, 1
    %p139 = scmp.eq.s32.totalorder %s12, 1
    %p140 = scmp.ne.s32.totalorder %s135, %s137
    %p141 = scmp.eq.s32.totalorder %s12, 0
    %p142 = por %p140, %p141
    %p143 = scmp.ne.s32.totalorder %s135, %s137
    %p144 = scmp.eq.s32.totalorder %s17, 1
    %p145 = por %p143, %p144
    %p146 = scmp.ne.s32.totalorder %s137, %s138
    %p147 = scmp.eq.s32.totalorder %s17, 0
    %p148 = por %p146, %p147
    %p149 = scmp.ne.s32.totalorder %s137, %s138
    %p150 = scmp.eq.s32.totalorder %s18, 1
    %p151 = por %p149, %p150
    %p153 = scmp.ne.s32.totalorder %s138, %s152
    %p154 = scmp.eq.s32.totalorder %s18, 0
    %p155 = por %p153, %p154
    %s156 = ssub.s32 %s12, %s19
    %p157 = scmp.eq.s32.totalorder %s156, 0
    %s159 = sadd.s32 %s158, 1
    %s160 = scalar_select %p157, %s158, %s159
    %p163 = pneg %p157
    %p164 = scmp.eq.s32.totalorder %s12, 1
    %p165 = por %p163, %p164
    %p166 = scmp.ne.s32.totalorder %s158, %s161
    %p167 = scmp.eq.s32.totalorder %s12, 0
    %p168 = por %p166, %p167
    %p169 = scmp.ne.s32.totalorder %s158, %s161
    %p170 = scmp.eq.s32.totalorder %s17, 1
    %p171 = por %p169, %p170
    %p172 = scmp.ne.s32.totalorder %s161, %s162
    %p173 = scmp.eq.s32.totalorder %s17, 0
    %p174 = por %p172, %p173
    %p175 = scmp.ne.s32.totalorder %s161, %s162
    %p176 = scmp.eq.s32.totalorder %s18, 1
    %p177 = por %p175, %p176
    %p179 = scmp.ne.s32.totalorder %s162, %s178
    %p180 = scmp.eq.s32.totalorder %s18, 0
    %p181 = por %p179, %p180
    %p182 = scmp.le.s32.totalorder 1, %s12
    %p183 = scmp.lt.s32.totalorder %s12, 3
    %p184 = pnand %p182, %p183
    %p185 = pneg %p184
    // Predicated region
    $region9: #{res_block_forward.5} parent=5 // pred_check
      _
    $region10: #{res_block_forward.5} parent=5 // pred_check_branch
      %187 = sbr.rel (%p184) target = $region12
    $region11: #{res_block_forward.5} parent=5 // pred_region
      %s188 = ssub.s32 %s12, 1
      // Predicated region
      $region13: #{res_block_forward.5} parent=11 // pred_check
        %p189 = pneg %p85
      $region14: #{res_block_forward.5} parent=11 // pred_check_branch
        %191 = sbr.rel (%p189) target = $region16
      $region15: #{res_block_forward.5} parent=11 // pred_region
        _
      $region16: #{res_block_forward.5} parent=11 // pred_fallthru
        _
      // Predicated region
      $region17: #{res_block_forward.5} parent=11 // pred_check
        %p192 = pneg %p106
      $region18: #{res_block_forward.5} parent=11 // pred_check_branch
        %194 = sbr.rel (%p192) target = $region20
      $region19: #{res_block_forward.5} parent=11 // pred_region
        _
      $region20: #{res_block_forward.5} parent=11 // pred_fallthru
        _
      // Predicated region
      $region21: #{res_block_forward.5} parent=11 // pred_check
        %p195 = pneg %p127
      $region22: #{res_block_forward.5} parent=11 // pred_check_branch
        %197 = sbr.rel (%p195) target = $region24
      $region23: #{res_block_forward.5} parent=11 // pred_region
        _
      $region24: #{res_block_forward.5} parent=11 // pred_fallthru
        _
      // Predicated region
      $region25: #{res_block_forward.5} parent=11 // pred_check
        %p198 = pneg %p148
      $region26: #{res_block_forward.5} parent=11 // pred_check_branch
        %200 = sbr.rel (%p198) target = $region28
      $region27: #{res_block_forward.5} parent=11 // pred_region
        _
      $region28: #{res_block_forward.5} parent=11 // pred_fallthru
        _
    $region12: #{res_block_forward.5} parent=5 // pred_fallthru
      _
    %p201 = scmp.lt.s32.totalorder %s12, 2
    // Predicated region
    $region29: #{res_block_forward.5} parent=5 // pred_check
      %p202 = pneg %p201
    $region30: #{res_block_forward.5} parent=5 // pred_check_branch
      %204 = sbr.rel (%p202) target = $region32
    $region31: #{res_block_forward.5} parent=5 // pred_region
      // Predicated region
      $region33: #{res_block_forward.5} parent=31 // pred_check
        %p205 = pneg %p32
      $region34: #{res_block_forward.5} parent=31 // pred_check_branch
        %207 = sbr.rel (%p205) target = $region36
      $region35: #{res_block_forward.5} parent=31 // pred_region
        %p208 = scmp.lt.s32.totalorder %s12, 1
        %s209 = scalar_select %p208, %s12, 1
        %s210 = smul.addr %s209, 2
        %s211 = smul.addr %s210, 8
        %s212 = scalar_lea.vmem %s0, %s211
      $region36: #{res_block_forward.5} parent=31 // pred_fallthru
        _
      // Predicated region
      $region37: #{res_block_forward.5} parent=31 // pred_check
        %p213 = pneg %p58
      $region38: #{res_block_forward.5} parent=31 // pred_check_branch
        %215 = sbr.rel (%p213) target = $region40
      $region39: #{res_block_forward.5} parent=31 // pred_region
        %p216 = scmp.lt.s32.totalorder %s12, 1
        %s217 = scalar_select %p216, %s12, 1
        %s218 = smul.addr %s217, 2
        %s219 = smul.addr %s218, 8
        %s220 = scalar_lea.vmem %s1, %s219
      $region40: #{res_block_forward.5} parent=31 // pred_fallthru
        _
    $region32: #{res_block_forward.5} parent=5 // pred_fallthru
      _
    %p221 = scmp.le.s32.totalorder 1, %s12
    %p222 = scmp.lt.s32.totalorder %s12, 3
    %p223 = pnand %p221, %p222
    %p224 = pneg %p223
    // Predicated region
    $region41: #{res_block_forward.5} parent=5 // pred_check
      _
    $region42: #{res_block_forward.5} parent=5 // pred_check_branch
      %226 = sbr.rel (%p223) target = $region44
    $region43: #{res_block_forward.5} parent=5 // pred_region
      %s227 = ssub.s32 %s12, 1
      %p228 = scmp.lt.s32.totalorder %s17, 1
      %s229 = scalar_select %p228, %s17, 1
      %s230 = smul.addr %s229, 2
      %s231 = smul.addr %s230, 8
      %s232 = scalar_lea.vmem %s0, %s231
      %p233 = pneg %p38
      %p234 = pneg %p35
      %p235 = scmp.lt.s32.totalorder %s17, 1
      %s236 = scalar_select %p235, %s17, 1
      %s237 = smul.addr %s236, 2
      %s238 = smul.addr %s237, 8
      %s239 = scalar_lea.vmem %s1, %s238
      %p240 = pneg %p64
      %p241 = pneg %p61
      %p242 = pneg %p85
      %p243 = pneg %p82
      %p244 = pneg %p106
      %p245 = pneg %p103
      %p246 = pneg %p127
      %p247 = pneg %p124
      %p248 = pneg %p148
      %p249 = pneg %p145
      %p250 = pneg %p174
      %p251 = pneg %p171
      %p252 = scmp.lt.s32.totalorder %s17, 1
      %s253 = scalar_select %p252, %s17, 1
      %s254 = smul.addr %s253, 2
      %s255 = smul.addr %s254, 8
      %s256 = scalar_lea.vmem %s6, %s255
      %p257 = scmp.lt.s32.totalorder %s17, 1
      %s258 = scalar_select %p257, %s17, 1
      %s259 = smul.addr %s258, 2
      %s260 = smul.addr %s259, 8
      %s261 = scalar_lea.vmem %s0, %s260
      %p262 = scmp.lt.s32.totalorder %s17, 1
      %s263 = scalar_select %p262, %s17, 1
      %s264 = smul.addr %s263, 2
      %s265 = smul.addr %s264, 8
      %s266 = scalar_lea.vmem %s1, %s265
      %p267 = scmp.lt.s32.totalorder %s17, 1
      %s268 = scalar_select %p267, %s17, 1
      %s269 = smul.addr %s268, 2
      %s270 = smul.addr %s269, 8
      %s271 = scalar_lea.vmem %s6, %s270
      %v272 = vld [vmem:[%s261] sm:$0xff]
      %v273 = vld [vmem:[%s261 + $0x8] sm:$0xff]
      %v274 = vld [vmem:[%s2] sm:$0x1]
      %v276 = vlaneseq
      %v277 = vshrl.u32 %v276, 7
      %v278 = vsub.s32 0, %v277
      %v279 = vrot.slane %v274, %v278
      %v281 = vmul.f32 %v272, %v279
      %v282 = vmul.f32 %v273, %v279
      %v283 = vld [vmem:[%s3] sm:$0x1]
      %v285 = vlaneseq
      %v286 = vshrl.u32 %v285, 7
      %v287 = vsub.s32 0, %v286
      %v288 = vrot.slane %v283, %v287
      %v290 = vadd.f32 %v281, %v288
      %v291 = vadd.f32 %v282, %v288
      %v292 = vld [vmem:[%s266] sm:$0xff]
      %v293 = vld [vmem:[%s266 + $0x8] sm:$0xff]
      %v294 = vld [vmem:[%s4] sm:$0x1]
      %v296 = vlaneseq
      %v297 = vshrl.u32 %v296, 7
      %v298 = vsub.s32 0, %v297
      %v299 = vrot.slane %v294, %v298
      %v301 = vmul.f32 %v292, %v299
      %v302 = vmul.f32 %v293, %v299
      %v303 = vadd.f32 %v290, %v301
      %v304 = vadd.f32 %v291, %v302
      %v305 = vld [vmem:[%s5] sm:$0x1]
      %v307 = vlaneseq
      %v308 = vshrl.u32 %v307, 7
      %v309 = vsub.s32 0, %v308
      %v310 = vrot.slane %v305, %v309
      %v312 = vadd.f32 %v303, %v310
      %v313 = vadd.f32 %v304, %v310
      %v314 = vmax.f32 %v312, 0.0
      %v315 = vmax.f32 %v313, 0.0
      %316 = vst [vmem:[%s271] sm:$0xff] %v314
      %317 = vst [vmem:[%s271 + $0x8] sm:$0xff] %v315
      %p318 = scmp.lt.s32.totalorder %s17, 1
      %s319 = scalar_select %p318, %s17, 1
      %s320 = smul.addr %s319, 2
      %s321 = smul.addr %s320, 8
      %s322 = scalar_lea.vmem %s6, %s321
      // Predicated region
      $region45: #{res_block_forward.5} parent=43 // pred_check
        %p323 = pneg %p171
      $region46: #{res_block_forward.5} parent=43 // pred_check_branch
        %325 = sbr.rel (%p323) target = $region48
      $region47: #{res_block_forward.5} parent=43 // pred_region
        _
      $region48: #{res_block_forward.5} parent=43 // pred_fallthru
        _
    $region44: #{res_block_forward.5} parent=5 // pred_fallthru
      _
    %p326 = scmp.le.s32.totalorder 2, %s12
    // Predicated region
    $region49: #{res_block_forward.5} parent=5 // pred_check
      %p327 = pneg %p326
    $region50: #{res_block_forward.5} parent=5 // pred_check_branch
      %329 = sbr.rel (%p327) target = $region52
    $region51: #{res_block_forward.5} parent=5 // pred_region
      %s330 = ssub.s32 %s12, 2
      // Predicated region
      $region53: #{res_block_forward.5} parent=51 // pred_check
        %p331 = pneg %p177
      $region54: #{res_block_forward.5} parent=51 // pred_check_branch
        %333 = sbr.rel (%p331) target = $region56
      $region55: #{res_block_forward.5} parent=51 // pred_region
        %p334 = scmp.lt.s32.totalorder %s18, 1
        %s335 = scalar_select %p334, %s18, 1
        %s336 = smul.addr %s335, 2
        %s337 = smul.addr %s336, 8
        %s338 = scalar_lea.vmem %s6, %s337
      $region56: #{res_block_forward.5} parent=51 // pred_fallthru
        _
    $region52: #{res_block_forward.5} parent=5 // pred_fallthru
      _
  $region6: #{res_block_forward.5} parent=0 // loop_footer
    %s16 = sadd.s32 1, %s12
  $region7: #{res_block_forward.5} parent=0 // loop_footer_branch
    %11 = sbr.rel target = $region3
  $region8: #{res_block_forward.5} parent=0 // loop_exit
    _

</llo_original>
